<compile_context>
chip_gen: v5e
topology: v5e:2x2
jax: 0.10.0
libtpu: 0.0.40
codegen_flags: <defaults>
</compile_context>

<pallas_src>
import jax
import jax.numpy as jnp
from jax import lax
from jax.experimental import pallas as pl
from jax.experimental.pallas import tpu as pltpu

# ----------------------- model config (small, synthetic) -----------------------
CFG = dict(
    n_layer=2,      # torch module uses 24; shrunk for the demo
    n_embd=64,      # torch uses 2048
    n_head=2,
    head_size=32,   # n_head * head_size == n_embd
    vocab=256,      # torch uses 65536
    tmix_dim=16,    # time_maa lora inner dim (torch hardcodes 32)
    decay_dim=16,   # time_decay lora inner dim
)

# ----------------------------- Pallas matmul kernels -----------------------------
def _matmul_kernel(a_ref, b_ref, o_ref, acc_ref):
    @pl.when(pl.program_id(2) == 0)
    def _():
        acc_ref[...] = jnp.zeros_like(acc_ref)

    acc_ref[...] += jnp.dot(a_ref[...], b_ref[...],
                            preferred_element_type=jnp.float32)

    @pl.when(pl.program_id(2) == pl.num_programs(2) - 1)
    def _():
        o_ref[...] = acc_ref[...].astype(o_ref.dtype)


def _pick_tile(dim, preferred):
    # MXU-aligned tile when it divides evenly, otherwise a full-dim block
    # (demo shapes are tiny; real-config dims (2048, 65536) are 256-multiples).
    return preferred if (dim >= preferred and dim % preferred == 0) else dim


def pallas_matmul(a, b, tm=256, tn=256, tk=512):
    """a @ b (2-D).  bf16 operands, f32 accumulation, tiled + double-buffered."""
    M, K = a.shape
    K2, N = b.shape
    assert K == K2
    tm, tn, tk = _pick_tile(M, tm), _pick_tile(N, tn), _pick_tile(K, tk)
    grid = (M // tm, N // tn, K // tk)
    return pl.pallas_call(
        _matmul_kernel,
        out_shape=jax.ShapeDtypeStruct((M, N), jnp.float32),
        grid=grid,
        in_specs=[pl.BlockSpec((tm, tk), lambda i, j, k: (i, k)),
                  pl.BlockSpec((tk, tn), lambda i, j, k: (k, j))],
        out_specs=pl.BlockSpec((tm, tn), lambda i, j, k: (i, j)),
        scratch_shapes=[pltpu.VMEM((tm, tn), jnp.float32)],
        compiler_params=pltpu.CompilerParams(
            dimension_semantics=("parallel", "parallel", "arbitrary")),
    )(a.astype(jnp.bfloat16), b.astype(jnp.bfloat16))


def _bmm_kernel(a_ref, b_ref, o_ref):
    o_ref[0] = jnp.dot(a_ref[0], b_ref[0], preferred_element_type=jnp.float32)


# TODO(synk): pallas_bmm uses one full (M,K)x(K,N) block per group; the real
# config (C=2048, long sequences) additionally needs per-group M/N/K tiling.
def pallas_bmm(a, b):
    """Grouped matmul: (G, M, K) @ (G, K, N) -> (G, M, N); one grid step per group.

    Used to fuse what were previously several independent pallas_call launches
    (K/V/R/G projections, 5-way time_maa lora, ffn R/K)."""
    G, M, K = a.shape
    G2, K2, N = b.shape
    assert G == G2 and K == K2
    return pl.pallas_call(
        _bmm_kernel,
        out_shape=jax.ShapeDtypeStruct((G, M, N), jnp.float32),
        grid=(G,),
        in_specs=[pl.BlockSpec((1, M, K), lambda g: (g, 0, 0)),
                  pl.BlockSpec((1, K, N), lambda g: (g, 0, 0))],
        out_specs=pl.BlockSpec((1, M, N), lambda g: (g, 0, 0)),
        compiler_params=pltpu.CompilerParams(dimension_semantics=("parallel",)),
    )(a.astype(jnp.bfloat16), b.astype(jnp.bfloat16))


# --------------------------- Pallas chunked WKV kernel ---------------------------
def _wkv_chunk_len(T):
    if T <= 32:
        return T
    for L in (32, 16, 8):
        if T % L == 0:
            return L
    return T


def _wkv_kernel(r_ref, k_ref, v_ref, lw_ref, u_ref, s0_ref, o_ref, sT_ref):
    # r/k/v/lw_ref : (1, T, C)  with C = H*N, channels head-major; lw = log(w)
    # u_ref        : (1, C)     time_faaaa flattened head-major (shared, untiled)
    # s0/sT_ref    : (1, H, N, N)  per-head state (rows = k index, cols = v index)
    # o_ref        : (1, T, C)  lane-dense output
    T, C = r_ref.shape[1], r_ref.shape[2]
    H, N = s0_ref.shape[1], s0_ref.shape[2]
    L = _wkv_chunk_len(T)
    n_chunks = T // L

    # masks, built once
    row = lax.broadcasted_iota(jnp.int32, (L, L), 0)
    col = lax.broadcasted_iota(jnp.int32, (L, L), 1)
    incl = (col <= row).astype(jnp.float32)            # inclusive lower triangle
    eye_n = (lax.broadcasted_iota(jnp.int32, (N, N), 0) ==
             lax.broadcasted_iota(jnp.int32, (N, N), 1)).astype(jnp.float32)

    u = u_ref[...]                                      # (1, C)

    def chunk_body(c, S):                               # S: (H, N, N) state carry
        t0 = pl.multiple_of(c * L, L)
        r = r_ref[0, pl.ds(t0, L), :]
        k = k_ref[0, pl.ds(t0, L), :]
        v = v_ref[0, pl.ds(t0, L), :]
        lw = lw_ref[0, pl.ds(t0, L), :]                 # log(w) = -exp(w_pre) <= 0

        # inclusive cumulative log-decay via triangular matmul (MXU) + exp (EUP)
        cums = jnp.dot(incl, lw, preferred_element_type=jnp.float32)   # (L, C)
        cend = cums[L - 1:L, :]                         # (1, C) total chunk decay
        half = 0.5 * cend                               # centering (overflow guard)
        r_dec = r * jnp.exp(cums - lw)                  # r_t * prod_{s<t} w_s   (<=1)
        r_cen = r * jnp.exp(cums - lw - half)           # centered, intra-chunk scores
        k_cen = k * jnp.exp(half - cums)                # centered, intra-chunk scores
        k_hat = k * jnp.exp(cend - cums)                # k_s * prod_{s<tau} w_tau (<=1)
        a_end = jnp.exp(cend)                           # (1, C)
        ru = r * u

        o_heads, s_heads = [], []
        for h in range(H):
            sl = slice(h * N, (h + 1) * N)
            vh, Sh = v[:, sl], S[h]
            ae = a_end[:, sl]                           # (1, N)
            # intra-chunk scores: strictly-lower decayed part + u-weighted diagonal
            p_low = lax.dot_general(r_cen[:, sl], k_cen[:, sl],
                                    (((1,), (1,)), ((), ())),
                                    preferred_element_type=jnp.float32)
            p_diag = lax.dot_general(ru[:, sl], k[:, sl],
                                     (((1,), (1,)), ((), ())),
                                     preferred_element_type=jnp.float32)
            p = (jnp.where(col < row, p_low, 0.0) +
                 jnp.where(col == row, p_diag, 0.0))
            o_h = (jnp.dot(p, vh, preferred_element_type=jnp.float32) +
                   jnp.dot(r_dec[:, sl], Sh, preferred_element_type=jnp.float32))
            # state update: S' = diag(a_end) @ S + sum_s (a_end/A_s) * k_s v_s^T
            Sh_new = (jnp.dot(eye_n * ae, Sh, preferred_element_type=jnp.float32) +
                      lax.dot_general(k_hat[:, sl], vh,
                                      (((0,), (0,)), ((), ())),
                                      preferred_element_type=jnp.float32))
            o_heads.append(o_h)
            s_heads.append(Sh_new)

        o_ref[0, pl.ds(t0, L), :] = jnp.concatenate(o_heads, axis=-1)
        return jnp.stack(s_heads, axis=0)

    s_final = lax.fori_loop(0, n_chunks, chunk_body, s0_ref[0])
    sT_ref[0] = s_final


def pallas_wkv(r, k, v, logw, u, s0):
    """Chunked RWKV6 recurrence.  r/k/v/logw: (B, T, C); u: (1, C); s0: (B, H, N, N)."""
    B, T, C = r.shape
    H, N = s0.shape[1], s0.shape[2]
    return pl.pallas_call(
        _wkv_kernel,
        out_shape=(jax.ShapeDtypeStruct((B, T, C), jnp.float32),
                   jax.ShapeDtypeStruct((B, H, N, N), jnp.float32)),
        grid=(B,),
        in_specs=[pl.BlockSpec((1, T, C), lambda b: (b, 0, 0)),
                  pl.BlockSpec((1, T, C), lambda b: (b, 0, 0)),
                  pl.BlockSpec((1, T, C), lambda b: (b, 0, 0)),
                  pl.BlockSpec((1, T, C), lambda b: (b, 0, 0)),
                  pl.BlockSpec((1, C), lambda b: (0, 0)),
                  pl.BlockSpec((1, H, N, N), lambda b: (b, 0, 0, 0))],
        out_specs=[pl.BlockSpec((1, T, C), lambda b: (b, 0, 0)),
                   pl.BlockSpec((1, H, N, N), lambda b: (b, 0, 0, 0))],
        compiler_params=pltpu.CompilerParams(dimension_semantics=("parallel",)),
    )(r.astype(jnp.float32), k.astype(jnp.float32), v.astype(jnp.float32),
      logw.astype(jnp.float32), u.astype(jnp.float32), s0.astype(jnp.float32))


# ----------------------------------- glue ops -----------------------------------
def layer_norm(x, w, b, eps=1e-5):
    mu = jnp.mean(x, axis=-1, keepdims=True)
    var = jnp.mean(jnp.square(x - mu), axis=-1, keepdims=True)
    return (x - mu) / jnp.sqrt(var + eps) * w + b


def group_norm(x2d, groups, w, b, eps=1e-5):
    M, C = x2d.shape
    xg = x2d.reshape(M, groups, C // groups)
    mu = jnp.mean(xg, axis=-1, keepdims=True)
    var = jnp.mean(jnp.square(xg - mu), axis=-1, keepdims=True)
    xn = ((xg - mu) / jnp.sqrt(var + eps)).reshape(M, C)
    return xn * w + b


# ------------------------------- RWKV block logic -------------------------------
def time_mixing(x, state, i, att):
    B, T, C = x.shape
    H, N = CFG['n_head'], CFG['head_size']
    i1 = (2 + N) * i + 1
    BT = B * T

    prev = jnp.concatenate([state[:, i1][:, None, :], x[:, :-1]], axis=1)
    sx = prev - x
    state = state.at[:, i1].set(x[:, -1])

    xxx = (x + sx * att['time_maa_x']).reshape(BT, C)
    lora = jnp.tanh(pallas_matmul(xxx, att['time_maa_w1']))          # (BT, 5*W1)
    W1 = att['time_maa_w1'].shape[1] // 5
    lora5 = lora.reshape(BT, 5, W1).transpose(1, 0, 2)               # (5, BT, W1)
    mix = pallas_bmm(lora5, att['time_maa_w2'])                      # (5, BT, C)
    mix = mix.transpose(1, 0, 2).reshape(B, T, 5, C)

    x_kwvrg = (x[:, :, None, :]
               + sx[:, :, None, :] * (att['time_maa_stack'][None, None] + mix))
    xk = x_kwvrg[:, :, 0].reshape(BT, C)
    xw = x_kwvrg[:, :, 1].reshape(BT, C)
    xv = x_kwvrg[:, :, 2].reshape(BT, C)
    xr = x_kwvrg[:, :, 3].reshape(BT, C)
    xg = x_kwvrg[:, :, 4].reshape(BT, C)

    # fused K / V / R / G projections (one launch instead of four)
    kvrg = pallas_bmm(jnp.stack([xk, xv, xr, xg], axis=0), att['kvrg_wt'])
    k, v, r, g_lin = kvrg[0], kvrg[1], kvrg[2], kvrg[3]
    g = g_lin * jax.nn.sigmoid(g_lin)                                # SiLU

    dd = jnp.tanh(pallas_matmul(xw, att['time_decay_w1']))
    w_pre = att['time_decay'][None, :] + pallas_matmul(dd, att['time_decay_w2'])
    logw = -jnp.exp(w_pre)                                           # log of w = exp(-exp(.))

    s0 = state[:, i1 + 1:i1 + 1 + N, :].reshape(B, H, N, N)          # torch .view layout
    rwkv, sT = pallas_wkv(r.reshape(B, T, C), k.reshape(B, T, C),
                          v.reshape(B, T, C), logw.reshape(B, T, C),
                          att['u_flat'], s0)
    state = state.at[:, i1 + 1:i1 + 1 + N, :].set(sT.reshape(B, N, C))

    normed = group_norm(rwkv.reshape(BT, C), H, att['ln_x_w'], att['ln_x_b'], eps=1e-5)
    out = pallas_matmul(normed * g, att['output_wt']).reshape(B, T, C)
    return out, state


def channel_mixing(x, state, i, ffn):
    B, T, C = x.shape
    N = CFG['head_size']
    i0 = (2 + N) * i
    BT = B * T

    prev = jnp.concatenate([state[:, i0][:, None, :], x[:, :-1]], axis=1)
    sx = prev - x
    state = state.at[:, i0].set(x[:, -1])

    xk = (x + sx * ffn['time_maa_k']).reshape(BT, C)
    xr = (x + sx * ffn['time_maa_r']).reshape(BT, C)
    rk = pallas_bmm(jnp.stack([xr, xk], axis=0), ffn['rk_wt'])       # fused R/K
    r = jax.nn.sigmoid(rk[0])
    k = jnp.square(jax.nn.relu(rk[1]))
    out = r * pallas_matmul(k, ffn['value_wt'])
    return out.reshape(B, T, C), state


# TODO(synk): attn_mask zeroing path (_set_zero) not exercised; forward here
# implements the attn_mask=None path only.
def rwkv_forward(params, input_ids, state):
    B, T = input_ids.shape
    C, V = CFG['n_embd'], CFG['vocab']
    x = params['emb'][input_ids]                                     # embedding
    x = layer_norm(x, params['ln0_w'], params['ln0_b'])
    for i, blk in enumerate(params['blocks']):
        xa, state = time_mixing(layer_norm(x, blk['ln1_w'], blk['ln1_b']),
                                state, i, blk['att'])
        x = x + xa
        xc, state = channel_mixing(layer_norm(x, blk['ln2_w'], blk['ln2_b']),
                                   state, i, blk['ffn'])
        x = x + xc
    x = layer_norm(x, params['ln_out_w'], params['ln_out_b'])
    logits = pallas_matmul(x.reshape(B * T, C), params['head_wt']).reshape(B, T, V)
    return logits, state


# -------------------- one-time parameter prep (outside jit) --------------------
def prepare_params(params):
    """Pre-transpose nn.Linear weights to (in, out) and pre-stack fused groups."""
    C = CFG['n_embd']
    p = dict(params)
    p['head_wt'] = params['head_w'].T
    del p['head_w']
    blocks = []
    for blk in params['blocks']:
        att, ffn = blk['att'], blk['ffn']
        att_p = dict(
            time_maa_x=att['time_maa_x'],
            time_maa_stack=jnp.stack([att['time_maa_k'], att['time_maa_w'],
                                      att['time_maa_v'], att['time_maa_r'],
                                      att['time_maa_g']], axis=0),    # (5, C)
            time_maa_w1=att['time_maa_w1'],                           # (C, 5*W1)
            time_maa_w2=att['time_maa_w2'],                           # (5, W1, C)
            time_decay=att['time_decay'],
            time_decay_w1=att['time_decay_w1'],
            time_decay_w2=att['time_decay_w2'],
            u_flat=att['time_faaaa'].reshape(1, C),                   # (1, C)
            kvrg_wt=jnp.stack([att['key_w'].T, att['value_w'].T,
                               att['receptance_w'].T, att['gate_w'].T], 0),
            output_wt=att['output_w'].T,
            ln_x_w=att['ln_x_w'], ln_x_b=att['ln_x_b'],
        )
        ffn_p = dict(
            time_maa_k=ffn['time_maa_k'], time_maa_r=ffn['time_maa_r'],
            rk_wt=jnp.stack([ffn['receptance_w'].T, ffn['key_w'].T], 0),
            value_wt=ffn['value_w'].T,
        )
        blocks.append(dict(ln1_w=blk['ln1_w'], ln1_b=blk['ln1_b'],
                           ln2_w=blk['ln2_w'], ln2_b=blk['ln2_b'],
                           att=att_p, ffn=ffn_p))
    p['blocks'] = blocks
    return p


# ------------------------------ deterministic init ------------------------------
def init_params(key):
    C, H, N = CFG['n_embd'], CFG['n_head'], CFG['head_size']
    V, W1, D = CFG['vocab'], CFG['tmix_dim'], CFG['decay_dim']
    keys = iter(jax.random.split(key, 256))

    def nrm(shape, scale=0.1):
        return jax.random.normal(next(keys), shape, jnp.float32) * scale

    params = dict(
        emb=nrm((V, C), 0.1),
        ln0_w=jnp.ones((C,), jnp.float32) + nrm((C,), 0.01),
        ln0_b=nrm((C,), 0.01),
        ln_out_w=jnp.ones((C,), jnp.float32) + nrm((C,), 0.01),
        ln_out_b=nrm((C,), 0.01),
        head_w=nrm((V, C), 0.05),
        blocks=[],
    )
    for _ in range(CFG['n_layer']):
        att = dict(
            time_maa_x=nrm((C,)), time_maa_w=nrm((C,)), time_maa_k=nrm((C,)),
            time_maa_v=nrm((C,)), time_maa_r=nrm((C,)), time_maa_g=nrm((C,)),
            time_maa_w1=nrm((C, 5 * W1)), time_maa_w2=nrm((5, W1, C)),
            time_decay=nrm((C,), 0.5),
            time_decay_w1=nrm((C, D)), time_decay_w2=nrm((D, C)),
            time_faaaa=nrm((H, N, 1)),
            receptance_w=nrm((C, C), 0.05), key_w=nrm((C, C), 0.05),
            value_w=nrm((C, C), 0.05), output_w=nrm((C, C), 0.05),
            gate_w=nrm((C, C), 0.05),
            ln_x_w=jnp.ones((C,), jnp.float32) + nrm((C,), 0.01),
            ln_x_b=nrm((C,), 0.01),
        )
        ffn = dict(
            time_maa_k=nrm((C,)), time_maa_r=nrm((C,)),
            key_w=nrm((C, C), 0.05), receptance_w=nrm((C, C), 0.05),
            value_w=nrm((C, C), 0.05),
        )
        params['blocks'].append(dict(
            ln1_w=jnp.ones((C,), jnp.float32), ln1_b=jnp.zeros((C,), jnp.float32),
            ln2_w=jnp.ones((C,), jnp.float32), ln2_b=jnp.zeros((C,), jnp.float32),
            att=att, ffn=ffn))
    return params


# ---------------------- pure-JAX sequential WKV reference ----------------------
def wkv_reference(r, k, v, logw, u, s0):
    """Per-timestep reference matching the torch loop: S' = k v^T + w * S."""
    B, T, C = r.shape
    H, N = s0.shape[1], s0.shape[2]
    rh = r.reshape(B, T, H, N)
    kh = k.reshape(B, T, H, N)
    vh = v.reshape(B, T, H, N)
    wh = jnp.exp(logw).reshape(B, T, H, N)
    uh = u.reshape(H, N)

    def step(S, xs):
        r_t, k_t, v_t, w_t = xs                             # (B, H, N) each
        kv = k_t[..., :, None] * v_t[..., None, :]          # (B, H, N, N)
        wkv = uh[None, :, :, None] * kv + S
        o_t = jnp.einsum('bhi,bhij->bhj', r_t, wkv)
        return kv + w_t[..., :, None] * S, o_t

    xs = (jnp.moveaxis(rh, 1, 0), jnp.moveaxis(kh, 1, 0),
          jnp.moveaxis(vh, 1, 0), jnp.moveaxis(wh, 1, 0))
    s_fin, o = lax.scan(step, s0, xs)
    return jnp.moveaxis(o, 0, 1).reshape(B, T, C), s_fin


if __name__ == "__main__":
    key = jax.random.PRNGKey(0)
    pkey, ikey = jax.random.split(key)
    params = prepare_params(init_params(pkey))

    B, T = 2, 8
    input_ids = jax.random.randint(ikey, (B, T), 0, CFG['vocab'])
    state = jnp.zeros((B, CFG['n_layer'] * (2 + CFG['head_size']), CFG['n_embd']),
                      jnp.float32)   # == new_zero_state(batch_size=B)

    # sanity check: chunked Pallas WKV == sequential per-step recurrence
    H, N = CFG['n_head'], CFG['head_size']
    C = H * N
    tks = jax.random.split(jax.random.PRNGKey(1), 6)
    rr = jax.random.normal(tks[0], (B, T, C), jnp.float32) * 0.5
    kk = jax.random.normal(tks[1], (B, T, C), jnp.float32) * 0.5
    vv = jax.random.normal(tks[2], (B, T, C), jnp.float32) * 0.5
    lww = -jnp.exp(jax.random.normal(tks[3], (B, T, C), jnp.float32) * 0.3)
    uu = jax.random.normal(tks[4], (1, C), jnp.float32) * 0.3
    ss0 = jax.random.normal(tks[5], (B, H, N, N), jnp.float32) * 0.3
    o_pl, s_pl = pallas_wkv(rr, kk, vv, lww, uu, ss0)
    o_rf, s_rf = wkv_reference(rr, kk, vv, lww, uu, ss0)
    assert jnp.allclose(o_pl, o_rf, rtol=2e-3, atol=2e-3)
    assert jnp.allclose(s_pl, s_rf, rtol=2e-3, atol=2e-3)

    fwd = jax.jit(rwkv_forward)
    logits, new_state = fwd(params, input_ids, state)
    jax.block_until_ready((logits, new_state))

    assert logits.shape == (B, T, CFG['vocab'])
    assert new_state.shape == state.shape
    print("KERNEL_OK")
</pallas_src>

<mosaic_0001>
module attributes {stable_mosaic.version = 11 : i64} {
  func.func @_wkv_kernel(%arg0: i32, %arg1: memref<1x8x64xf32, #tpu.memory_space<vmem>>, %arg2: memref<1x8x64xf32, #tpu.memory_space<vmem>>, %arg3: memref<1x8x64xf32, #tpu.memory_space<vmem>>, %arg4: memref<1x8x64xf32, #tpu.memory_space<vmem>>, %arg5: memref<1x64xf32, #tpu.memory_space<vmem>>, %arg6: memref<1x2x32x32xf32, #tpu.memory_space<vmem>>, %arg7: memref<1x8x64xf32, #tpu.memory_space<vmem>>, %arg8: memref<1x2x32x32xf32, #tpu.memory_space<vmem>>) attributes {dimension_semantics = [#tpu.dimension_semantics<parallel>], iteration_bounds = array<i64: 2>, scalar_prefetch = 0 : i64, scratch_operands = 0 : i64, tpu.core_type = #tpu.core_type<tc>, window_params = [{transform_indices = @transform_0, window_bounds = array<i64: 1, 8, 64>}, {transform_indices = @transform_1, window_bounds = array<i64: 1, 8, 64>}, {transform_indices = @transform_2, window_bounds = array<i64: 1, 8, 64>}, {transform_indices = @transform_3, window_bounds = array<i64: 1, 8, 64>}, {pipeline_mode = #tpu.pipeline_mode<synchronous>, transform_indices = @transform_4, window_bounds = array<i64: 1, 64>}, {transform_indices = @transform_5, window_bounds = array<i64: 1, 2, 32, 32>}, {transform_indices = @transform_6, window_bounds = array<i64: 1, 8, 64>}, {transform_indices = @transform_7, window_bounds = array<i64: 1, 2, 32, 32>}]} {
    %0 = tpu.iota {dimensions = array<i32: 0>} : vector<8x8xi32>
    %1 = tpu.iota {dimensions = array<i32: 1>} : vector<8x8xi32>
    %2 = arith.cmpi sle, %1, %0 : vector<8x8xi32>
    %3 = arith.extui %2 : vector<8x8xi1> to vector<8x8xi32>
    %4 = arith.sitofp %3 : vector<8x8xi32> to vector<8x8xf32>
    %5 = tpu.iota {dimensions = array<i32: 0>} : vector<32x32xi32>
    %6 = tpu.iota {dimensions = array<i32: 1>} : vector<32x32xi32>
    %7 = arith.cmpi eq, %5, %6 : vector<32x32xi32>
    %8 = arith.extui %7 : vector<32x32xi1> to vector<32x32xi32>
    %9 = arith.sitofp %8 : vector<32x32xi32> to vector<32x32xf32>
    %c0 = arith.constant 0 : index
    %c0_0 = arith.constant 0 : index
    %10 = vector.load %arg5[%c0, %c0_0] : memref<1x64xf32, #tpu.memory_space<vmem>>, vector<1x64xf32>
    %c0_1 = arith.constant 0 : index
    %c0_2 = arith.constant 0 : index
    %c0_3 = arith.constant 0 : index
    %c0_4 = arith.constant 0 : index
    %11 = vector.load %arg6[%c0_1, %c0_2, %c0_3, %c0_4] : memref<1x2x32x32xf32, #tpu.memory_space<vmem>>, vector<1x2x32x32xf32>
    %12 = vector.shape_cast %11 : vector<1x2x32x32xf32> to vector<2x32x32xf32>
    %c0_i32 = arith.constant 0 : i32
    %c8_i32 = arith.constant 8 : i32
    %13 = arith.muli %c0_i32, %c8_i32 : i32
    %14 = tpu.assume_multiple %13, 8 : i32
    %c0_5 = arith.constant 0 : index
    %15 = arith.index_cast %14 : i32 to index
    %c0_6 = arith.constant 0 : index
    %16 = vector.load %arg1[%c0_5, %15, %c0_6] : memref<1x8x64xf32, #tpu.memory_space<vmem>>, vector<1x8x64xf32>
    %17 = vector.shape_cast %16 : vector<1x8x64xf32> to vector<8x64xf32>
    %c0_7 = arith.constant 0 : index
    %18 = arith.index_cast %14 : i32 to index
    %c0_8 = arith.constant 0 : index
    %19 = vector.load %arg2[%c0_7, %18, %c0_8] : memref<1x8x64xf32, #tpu.memory_space<vmem>>, vector<1x8x64xf32>
    %20 = vector.shape_cast %19 : vector<1x8x64xf32> to vector<8x64xf32>
    %c0_9 = arith.constant 0 : index
    %21 = arith.index_cast %14 : i32 to index
    %c0_10 = arith.constant 0 : index
    %22 = vector.load %arg3[%c0_9, %21, %c0_10] : memref<1x8x64xf32, #tpu.memory_space<vmem>>, vector<1x8x64xf32>
    %23 = vector.shape_cast %22 : vector<1x8x64xf32> to vector<8x64xf32>
    %c0_11 = arith.constant 0 : index
    %24 = arith.index_cast %14 : i32 to index
    %c0_12 = arith.constant 0 : index
    %25 = vector.load %arg4[%c0_11, %24, %c0_12] : memref<1x8x64xf32, #tpu.memory_space<vmem>>, vector<1x8x64xf32>
    %26 = vector.shape_cast %25 : vector<1x8x64xf32> to vector<8x64xf32>
    %cst = arith.constant dense<0.000000e+00> : vector<8x64xf32>
    %27 = tpu.matmul %4, %26, %cst {dimension_numbers = #tpu.dot_dimension_numbers<[1], [0], [0], [1], [0, 0, 1, 1], [], []>} : vector<8x8xf32>, vector<8x64xf32>, vector<8x64xf32> -> vector<8x64xf32>
    %28 = vector.extract_strided_slice %27 {offsets = [7, 0], sizes = [1, 64], strides = [1, 1]} : vector<8x64xf32> to vector<1x64xf32>
    %cst_13 = arith.constant 5.000000e-01 : f32
    %29 = vector.broadcast %cst_13 : f32 to vector<1x64xf32>
    %30 = arith.mulf %29, %28 : vector<1x64xf32>
    %31 = arith.subf %27, %26 : vector<8x64xf32>
    %32 = math.exp %31 : vector<8x64xf32>
    %33 = arith.mulf %17, %32 : vector<8x64xf32>
    %34 = arith.subf %27, %26 : vector<8x64xf32>
    %35 = vector.broadcast %30 : vector<1x64xf32> to vector<8x64xf32>
    %36 = arith.subf %34, %35 : vector<8x64xf32>
    %37 = math.exp %36 : vector<8x64xf32>
    %38 = arith.mulf %17, %37 : vector<8x64xf32>
    %39 = vector.broadcast %30 : vector<1x64xf32> to vector<8x64xf32>
    %40 = arith.subf %39, %27 : vector<8x64xf32>
    %41 = math.exp %40 : vector<8x64xf32>
    %42 = arith.mulf %20, %41 : vector<8x64xf32>
    %43 = vector.broadcast %28 : vector<1x64xf32> to vector<8x64xf32>
    %44 = arith.subf %43, %27 : vector<8x64xf32>
    %45 = math.exp %44 : vector<8x64xf32>
    %46 = arith.mulf %20, %45 : vector<8x64xf32>
    %47 = math.exp %28 : vector<1x64xf32>
    %48 = vector.broadcast %10 : vector<1x64xf32> to vector<8x64xf32>
    %49 = arith.mulf %17, %48 : vector<8x64xf32>
    %50 = vector.extract_strided_slice %23 {offsets = [0, 0], sizes = [8, 32], strides = [1, 1]} : vector<8x64xf32> to vector<8x32xf32>
    %51 = vector.extract_strided_slice %12 {offsets = [0, 0, 0], sizes = [1, 32, 32], strides = [1, 1, 1]} : vector<2x32x32xf32> to vector<1x32x32xf32>
    %52 = vector.shape_cast %51 : vector<1x32x32xf32> to vector<32x32xf32>
    %53 = vector.extract_strided_slice %47 {offsets = [0, 0], sizes = [1, 32], strides = [1, 1]} : vector<1x64xf32> to vector<1x32xf32>
    %54 = vector.extract_strided_slice %38 {offsets = [0, 0], sizes = [8, 32], strides = [1, 1]} : vector<8x64xf32> to vector<8x32xf32>
    %55 = vector.extract_strided_slice %42 {offsets = [0, 0], sizes = [8, 32], strides = [1, 1]} : vector<8x64xf32> to vector<8x32xf32>
    %cst_14 = arith.constant dense<0.000000e+00> : vector<8x8xf32>
    %56 = tpu.matmul %54, %55, %cst_14 {dimension_numbers = #tpu.dot_dimension_numbers<[1], [1], [0], [0], [0, 0, 1, 0], [], []>} : vector<8x32xf32>, vector<8x32xf32>, vector<8x8xf32> -> vector<8x8xf32>
    %57 = vector.extract_strided_slice %49 {offsets = [0, 0], sizes = [8, 32], strides = [1, 1]} : vector<8x64xf32> to vector<8x32xf32>
    %58 = vector.extract_strided_slice %20 {offsets = [0, 0], sizes = [8, 32], strides = [1, 1]} : vector<8x64xf32> to vector<8x32xf32>
    %cst_15 = arith.constant dense<0.000000e+00> : vector<8x8xf32>
    %59 = tpu.matmul %57, %58, %cst_15 {dimension_numbers = #tpu.dot_dimension_numbers<[1], [1], [0], [0], [0, 0, 1, 0], [], []>} : vector<8x32xf32>, vector<8x32xf32>, vector<8x8xf32> -> vector<8x8xf32>
    %60 = arith.cmpi slt, %1, %0 : vector<8x8xi32>
    %cst_16 = arith.constant 0.000000e+00 : f32
    %61 = vector.broadcast %cst_16 : f32 to vector<8x8xf32>
    %62 = arith.select %60, %56, %61 : vector<8x8xi1>, vector<8x8xf32>
    %63 = arith.cmpi eq, %1, %0 : vector<8x8xi32>
    %cst_17 = arith.constant 0.000000e+00 : f32
    %64 = vector.broadcast %cst_17 : f32 to vector<8x8xf32>
    %65 = arith.select %63, %59, %64 : vector<8x8xi1>, vector<8x8xf32>
    %66 = arith.addf %62, %65 : vector<8x8xf32>
    %cst_18 = arith.constant dense<0.000000e+00> : vector<8x32xf32>
    %67 = tpu.matmul %66, %50, %cst_18 {dimension_numbers = #tpu.dot_dimension_numbers<[1], [0], [0], [1], [0, 0, 1, 1], [], []>} : vector<8x8xf32>, vector<8x32xf32>, vector<8x32xf32> -> vector<8x32xf32>
    %68 = vector.extract_strided_slice %33 {offsets = [0, 0], sizes = [8, 32], strides = [1, 1]} : vector<8x64xf32> to vector<8x32xf32>
    %cst_19 = arith.constant dense<0.000000e+00> : vector<8x32xf32>
    %69 = tpu.matmul %68, %52, %cst_19 {dimension_numbers = #tpu.dot_dimension_numbers<[1], [0], [0], [1], [0, 0, 1, 1], [], []>} : vector<8x32xf32>, vector<32x32xf32>, vector<8x32xf32> -> vector<8x32xf32>
    %70 = arith.addf %67, %69 : vector<8x32xf32>
    %71 = vector.broadcast %53 : vector<1x32xf32> to vector<32x32xf32>
    %72 = arith.mulf %9, %71 : vector<32x32xf32>
    %cst_20 = arith.constant dense<0.000000e+00> : vector<32x32xf32>
    %73 = tpu.matmul %72, %52, %cst_20 {dimension_numbers = #tpu.dot_dimension_numbers<[1], [0], [0], [1], [0, 0, 1, 1], [], []>} : vector<32x32xf32>, vector<32x32xf32>, vector<32x32xf32> -> vector<32x32xf32>
    %74 = vector.extract_strided_slice %46 {offsets = [0, 0], sizes = [8, 32], strides = [1, 1]} : vector<8x64xf32> to vector<8x32xf32>
    %cst_21 = arith.constant dense<0.000000e+00> : vector<32x32xf32>
    %75 = tpu.matmul %74, %50, %cst_21 {dimension_numbers = #tpu.dot_dimension_numbers<[0], [0], [1], [1], [0, 1, 1, 1], [], []>} : vector<8x32xf32>, vector<8x32xf32>, vector<32x32xf32> -> vector<32x32xf32>
    %76 = arith.addf %73, %75 : vector<32x32xf32>
    %77 = vector.extract_strided_slice %23 {offsets = [0, 32], sizes = [8, 32], strides = [1, 1]} : vector<8x64xf32> to vector<8x32xf32>
    %78 = vector.extract_strided_slice %12 {offsets = [1, 0, 0], sizes = [1, 32, 32], strides = [1, 1, 1]} : vector<2x32x32xf32> to vector<1x32x32xf32>
    %79 = vector.shape_cast %78 : vector<1x32x32xf32> to vector<32x32xf32>
    %80 = vector.extract_strided_slice %47 {offsets = [0, 32], sizes = [1, 32], strides = [1, 1]} : vector<1x64xf32> to vector<1x32xf32>
    %81 = vector.extract_strided_slice %38 {offsets = [0, 32], sizes = [8, 32], strides = [1, 1]} : vector<8x64xf32> to vector<8x32xf32>
    %82 = vector.extract_strided_slice %42 {offsets = [0, 32], sizes = [8, 32], strides = [1, 1]} : vector<8x64xf32> to vector<8x32xf32>
    %cst_22 = arith.constant dense<0.000000e+00> : vector<8x8xf32>
    %83 = tpu.matmul %81, %82, %cst_22 {dimension_numbers = #tpu.dot_dimension_numbers<[1], [1], [0], [0], [0, 0, 1, 0], [], []>} : vector<8x32xf32>, vector<8x32xf32>, vector<8x8xf32> -> vector<8x8xf32>
    %84 = vector.extract_strided_slice %49 {offsets = [0, 32], sizes = [8, 32], strides = [1, 1]} : vector<8x64xf32> to vector<8x32xf32>
    %85 = vector.extract_strided_slice %20 {offsets = [0, 32], sizes = [8, 32], strides = [1, 1]} : vector<8x64xf32> to vector<8x32xf32>
    %cst_23 = arith.constant dense<0.000000e+00> : vector<8x8xf32>
    %86 = tpu.matmul %84, %85, %cst_23 {dimension_numbers = #tpu.dot_dimension_numbers<[1], [1], [0], [0], [0, 0, 1, 0], [], []>} : vector<8x32xf32>, vector<8x32xf32>, vector<8x8xf32> -> vector<8x8xf32>
    %87 = arith.cmpi slt, %1, %0 : vector<8x8xi32>
    %cst_24 = arith.constant 0.000000e+00 : f32
    %88 = vector.broadcast %cst_24 : f32 to vector<8x8xf32>
    %89 = arith.select %87, %83, %88 : vector<8x8xi1>, vector<8x8xf32>
    %90 = arith.cmpi eq, %1, %0 : vector<8x8xi32>
    %cst_25 = arith.constant 0.000000e+00 : f32
    %91 = vector.broadcast %cst_25 : f32 to vector<8x8xf32>
    %92 = arith.select %90, %86, %91 : vector<8x8xi1>, vector<8x8xf32>
    %93 = arith.addf %89, %92 : vector<8x8xf32>
    %cst_26 = arith.constant dense<0.000000e+00> : vector<8x32xf32>
    %94 = tpu.matmul %93, %77, %cst_26 {dimension_numbers = #tpu.dot_dimension_numbers<[1], [0], [0], [1], [0, 0, 1, 1], [], []>} : vector<8x8xf32>, vector<8x32xf32>, vector<8x32xf32> -> vector<8x32xf32>
    %95 = vector.extract_strided_slice %33 {offsets = [0, 32], sizes = [8, 32], strides = [1, 1]} : vector<8x64xf32> to vector<8x32xf32>
    %cst_27 = arith.constant dense<0.000000e+00> : vector<8x32xf32>
    %96 = tpu.matmul %95, %79, %cst_27 {dimension_numbers = #tpu.dot_dimension_numbers<[1], [0], [0], [1], [0, 0, 1, 1], [], []>} : vector<8x32xf32>, vector<32x32xf32>, vector<8x32xf32> -> vector<8x32xf32>
    %97 = arith.addf %94, %96 : vector<8x32xf32>
    %98 = vector.broadcast %80 : vector<1x32xf32> to vector<32x32xf32>
    %99 = arith.mulf %9, %98 : vector<32x32xf32>
    %cst_28 = arith.constant dense<0.000000e+00> : vector<32x32xf32>
    %100 = tpu.matmul %99, %79, %cst_28 {dimension_numbers = #tpu.dot_dimension_numbers<[1], [0], [0], [1], [0, 0, 1, 1], [], []>} : vector<32x32xf32>, vector<32x32xf32>, vector<32x32xf32> -> vector<32x32xf32>
    %101 = vector.extract_strided_slice %46 {offsets = [0, 32], sizes = [8, 32], strides = [1, 1]} : vector<8x64xf32> to vector<8x32xf32>
    %cst_29 = arith.constant dense<0.000000e+00> : vector<32x32xf32>
    %102 = tpu.matmul %101, %77, %cst_29 {dimension_numbers = #tpu.dot_dimension_numbers<[0], [0], [1], [1], [0, 1, 1, 1], [], []>} : vector<8x32xf32>, vector<8x32xf32>, vector<32x32xf32> -> vector<32x32xf32>
    %103 = arith.addf %100, %102 : vector<32x32xf32>
    %104 = tpu.concatenate %70, %97 in 1 : vector<8x32xf32>, vector<8x32xf32> -> vector<8x64xf32>
    %c0_30 = arith.constant 0 : index
    %105 = arith.index_cast %14 : i32 to index
    %c0_31 = arith.constant 0 : index
    %106 = vector.load %arg7[%c0_30, %105, %c0_31] : memref<1x8x64xf32, #tpu.memory_space<vmem>>, vector<1x8x64xf32>
    %107 = vector.shape_cast %106 : vector<1x8x64xf32> to vector<8x64xf32>
    %108 = vector.shape_cast %104 : vector<8x64xf32> to vector<1x8x64xf32>
    tpu.vector_store %arg7[%c0_30, %105, %c0_31], %108 {strides = array<i32>} : memref<1x8x64xf32, #tpu.memory_space<vmem>>, vector<1x8x64xf32>,
    %109 = vector.shape_cast %76 : vector<32x32xf32> to vector<1x32x32xf32>
    %110 = vector.shape_cast %103 : vector<32x32xf32> to vector<1x32x32xf32>
    %111 = tpu.concatenate %109, %110 in 0 : vector<1x32x32xf32>, vector<1x32x32xf32> -> vector<2x32x32xf32>
    %c1_i32 = arith.constant 1 : i32
    %c0_32 = arith.constant 0 : index
    %c0_33 = arith.constant 0 : index
    %c0_34 = arith.constant 0 : index
    %c0_35 = arith.constant 0 : index
    %112 = vector.load %arg8[%c0_32, %c0_33, %c0_34, %c0_35] : memref<1x2x32x32xf32, #tpu.memory_space<vmem>>, vector<1x2x32x32xf32>
    %113 = vector.shape_cast %112 : vector<1x2x32x32xf32> to vector<2x32x32xf32>
    %114 = vector.shape_cast %111 : vector<2x32x32xf32> to vector<1x2x32x32xf32>
    tpu.vector_store %arg8[%c0_32, %c0_33, %c0_34, %c0_35], %114 {strides = array<i32>} : memref<1x2x32x32xf32, #tpu.memory_space<vmem>>, vector<1x2x32x32xf32>,
    return
  }
  func.func @transform_0(%arg0: i32) -> (i32, i32, i32) {
    %c0_i32 = arith.constant 0 : i32
    %c0_i32_0 = arith.constant 0 : i32
    %c0_i32_1 = arith.constant 0 : i32
    return %arg0, %c0_i32, %c0_i32_0 : i32, i32, i32
  }
  func.func @transform_1(%arg0: i32) -> (i32, i32, i32) {
    %c0_i32 = arith.constant 0 : i32
    %c0_i32_0 = arith.constant 0 : i32
    %c0_i32_1 = arith.constant 0 : i32
    return %arg0, %c0_i32, %c0_i32_0 : i32, i32, i32
  }
  func.func @transform_2(%arg0: i32) -> (i32, i32, i32) {
    %c0_i32 = arith.constant 0 : i32
    %c0_i32_0 = arith.constant 0 : i32
    %c0_i32_1 = arith.constant 0 : i32
    return %arg0, %c0_i32, %c0_i32_0 : i32, i32, i32
  }
  func.func @transform_3(%arg0: i32) -> (i32, i32, i32) {
    %c0_i32 = arith.constant 0 : i32
    %c0_i32_0 = arith.constant 0 : i32
    %c0_i32_1 = arith.constant 0 : i32
    return %arg0, %c0_i32, %c0_i32_0 : i32, i32, i32
  }
  func.func @transform_4(%arg0: i32) -> (i32, i32) {
    %c0_i32 = arith.constant 0 : i32
    %c0_i32_0 = arith.constant 0 : i32
    %c0_i32_1 = arith.constant 0 : i32
    return %c0_i32, %c0_i32_0 : i32, i32
  }
  func.func @transform_5(%arg0: i32) -> (i32, i32, i32, i32) {
    %c0_i32 = arith.constant 0 : i32
    %c0_i32_0 = arith.constant 0 : i32
    %c0_i32_1 = arith.constant 0 : i32
    %c0_i32_2 = arith.constant 0 : i32
    return %arg0, %c0_i32, %c0_i32_0, %c0_i32_1 : i32, i32, i32, i32
  }
  func.func @transform_6(%arg0: i32) -> (i32, i32, i32) {
    %c0_i32 = arith.constant 0 : i32
    %c0_i32_0 = arith.constant 0 : i32
    %c0_i32_1 = arith.constant 0 : i32
    return %arg0, %c0_i32, %c0_i32_0 : i32, i32, i32
  }
  func.func @transform_7(%arg0: i32) -> (i32, i32, i32, i32) {
    %c0_i32 = arith.constant 0 : i32
    %c0_i32_0 = arith.constant 0 : i32
    %c0_i32_1 = arith.constant 0 : i32
    %c0_i32_2 = arith.constant 0 : i32
    return %arg0, %c0_i32, %c0_i32_0, %c0_i32_1 : i32, i32, i32, i32
  }
}

</mosaic_0001>

<llo_original>
// kernel: tpu_custom_call.1
$region0: #{tpu_custom_call.1}
  #allocation0 [shape = 'u32[]', space=smem, size = 0x4, offset = 0x4, fixed_abs, tag = 'smem constant byte address 0x4 - core index']
  #allocation1 [shape = 'u32[72,128]{1,0:T(1,128)}', space=vmem, size = 0x9000, scoped, tag = 'internal scratch']
  %s0 = inlined_call_operand.hbm [shape: f32[2,8,64], index: 0, kind: input, shape index: {}]
  %s1 = inlined_call_operand.hbm [shape: f32[2,8,64], index: 1, kind: input, shape index: {}]
  %s2 = inlined_call_operand.hbm [shape: f32[2,8,64], index: 2, kind: input, shape index: {}]
  %s3 = inlined_call_operand.hbm [shape: f32[2,8,64], index: 3, kind: input, shape index: {}]
  %s4 = inlined_call_operand.vmem [shape: f32[1,64], index: 4, kind: input, shape index: {}]
  %s5 = inlined_call_operand.hbm [shape: f32[2,2,32,32], index: 5, kind: input, shape index: {}]
  %s6 = inlined_call_operand.hbm [shape: f32[2,8,64], index: 6, kind: output, shape index: {0}]
  %s7 = inlined_call_operand.hbm [shape: f32[2,2,32,32], index: 7, kind: output, shape index: {1}]
  %8 = xla_tuple %s6, %s7
  %s9 = sld [smem:[#allocation0]]
  $region85: #{tpu_custom_call.1} parent=0
    _
  %s11 = ssub.s32 1, %s9
  %s12 = scalar_select 0, %s11, %s9
  $region1: #{tpu_custom_call.1} parent=0
    #allocation2 [shape = 'u8[8192]{0}', space=vmem, size = 0x2000, scoped, tag = 'input window, operand 0']
    #allocation3 [shape = 's32[2]{0}', space=sflag, size = 0x8, scoped, tag = 'scoped memory for tpu_custom_call.1']
    #allocation4 [shape = 's32[2]{0}', space=sflag, size = 0x8, scoped, tag = 'scoped memory for tpu_custom_call.1']
    #allocation5 [shape = 'u8[8192]{0}', space=vmem, size = 0x2000, scoped, tag = 'input window, operand 1']
    #allocation6 [shape = 's32[2]{0}', space=sflag, size = 0x8, scoped, tag = 'scoped memory for tpu_custom_call.1']
    #allocation7 [shape = 'u8[8192]{0}', space=vmem, size = 0x2000, scoped, tag = 'input window, operand 2']
    #allocation8 [shape = 'u8[8192]{0}', space=vmem, size = 0x2000, scoped, tag = 'input window, operand 3']
    #allocation9 [shape = 's32[2]{0}', space=sflag, size = 0x8, scoped, tag = 'scoped memory for tpu_custom_call.1']
    #allocation10 [shape = 'u8[65536]{0}', space=vmem, size = 0x10000, scoped, tag = 'input window, operand 5']
    #allocation11 [shape = 'u8[8192]{0}', space=vmem, size = 0x2000, scoped, tag = 'output window, operand 0']
    #allocation12 [shape = 'u8[65536]{0}', space=vmem, size = 0x10000, scoped, tag = 'output window, operand 1']
    #allocation13 [shape = 's32[2]{0}', space=sflag, size = 0x8, scoped, tag = 'scoped memory for tpu_custom_call.1']
    %13 = vsyncpa [#allocation3], 0
    %s14 = scalar_lea.sflag [#allocation3], 1
    %15 = vsyncpa %s14, 0
    %16 = vsyncpa [#allocation6], 0
    %s17 = scalar_lea.sflag [#allocation6], 1
    %18 = vsyncpa %s17, 0
    %19 = vsyncpa [#allocation9], 0
    %s20 = scalar_lea.sflag [#allocation9], 1
    %21 = vsyncpa %s20, 0
    %22 = vsyncpa [#allocation4], 0
    %s23 = scalar_lea.sflag [#allocation4], 1
    %24 = vsyncpa %s23, 0
    %25 = vsyncpa [#allocation13], 0
    %s26 = scalar_lea.sflag [#allocation13], 1
    %27 = vsyncpa %s26, 0
    loop: start=0, step=1, limit=4
    $region2: #{tpu_custom_call.1} parent=1 // loop_pre_header
      _
    $region3: #{tpu_custom_call.1} parent=1 // loop_header
      %s29 = sphi 0, %s33
      %p30 = scmp.ge.s32.totalorder %s29, 4
      %s39 = sphi 0, %s41
      %s42 = sphi 0, %s39
      %s43 = sphi 0, %s42
      %s59 = sphi 0, %s43
      %s65 = sphi 0, %s67
      %s68 = sphi 0, %s65
      %s69 = sphi 0, %s68
      %s85 = sphi 0, %s69
      %s91 = sphi 0, %s93
      %s94 = sphi 0, %s91
      %s95 = sphi 0, %s94
      %s111 = sphi 0, %s95
      %s117 = sphi 0, %s119
      %s120 = sphi 0, %s117
      %s121 = sphi 0, %s120
      %s137 = sphi 0, %s121
      %s141 = sphi 0, %s141
      %s143 = sphi 0, %s141
      %s144 = sphi 0, %s143
      %s158 = sphi 0, %s144
      %s164 = sphi 0, %s166
      %s167 = sphi 0, %s164
      %s168 = sphi 0, %s167
      %s184 = sphi 0, %s168
      %s190 = sphi 0, %s192
      %s193 = sphi 0, %s190
      %s194 = sphi 0, %s193
      %s210 = sphi 0, %s194
      %s216 = sphi 0, %s218
      %s219 = sphi 0, %s216
      %s220 = sphi 0, %s219
      %s236 = sphi 0, %s220
    $region4: #{tpu_custom_call.1} parent=1 // loop_header_branch
      %32 = sbr.rel (%p30) target = $region8
    $region5: #{tpu_custom_call.1} parent=1 // loop_body
      %s34 = ssub.s32 %s29, 1
      %s35 = ssub.s32 %s29, 2
      %s36 = sadd.s32 %s29, 1
      %s37 = ssub.s32 %s29, %s36
      %p38 = scmp.eq.s32.totalorder %s37, 0
      %s40 = sadd.s32 %s39, 1
      %s41 = scalar_select %p38, %s39, %s40
      %p44 = pneg %p38
      %p45 = scmp.eq.s32.totalorder %s29, 1
      %p46 = por %p44, %p45
      %p47 = scmp.ne.s32.totalorder %s39, %s42
      %p48 = scmp.eq.s32.totalorder %s29, 0
      %p49 = por %p47, %p48
      %p50 = scmp.ne.s32.totalorder %s39, %s42
      %p51 = scmp.eq.s32.totalorder %s34, 1
      %p52 = por %p50, %p51
      %p53 = scmp.ne.s32.totalorder %s42, %s43
      %p54 = scmp.eq.s32.totalorder %s34, 0
      %p55 = por %p53, %p54
      %p56 = scmp.ne.s32.totalorder %s42, %s43
      %p57 = scmp.eq.s32.totalorder %s35, 1
      %p58 = por %p56, %p57
      %p60 = scmp.ne.s32.totalorder %s43, %s59
      %p61 = scmp.eq.s32.totalorder %s35, 0
      %p62 = por %p60, %p61
      %s63 = ssub.s32 %s29, %s36
      %p64 = scmp.eq.s32.totalorder %s63, 0
      %s66 = sadd.s32 %s65, 1
      %s67 = scalar_select %p64, %s65, %s66
      %p70 = pneg %p64
      %p71 = scmp.eq.s32.totalorder %s29, 1
      %p72 = por %p70, %p71
      %p73 = scmp.ne.s32.totalorder %s65, %s68
      %p74 = scmp.eq.s32.totalorder %s29, 0
      %p75 = por %p73, %p74
      %p76 = scmp.ne.s32.totalorder %s65, %s68
      %p77 = scmp.eq.s32.totalorder %s34, 1
      %p78 = por %p76, %p77
      %p79 = scmp.ne.s32.totalorder %s68, %s69
      %p80 = scmp.eq.s32.totalorder %s34, 0
      %p81 = por %p79, %p80
      %p82 = scmp.ne.s32.totalorder %s68, %s69
      %p83 = scmp.eq.s32.totalorder %s35, 1
      %p84 = por %p82, %p83
      %p86 = scmp.ne.s32.totalorder %s69, %s85
      %p87 = scmp.eq.s32.totalorder %s35, 0
      %p88 = por %p86, %p87
      %s89 = ssub.s32 %s29, %s36
      %p90 = scmp.eq.s32.totalorder %s89, 0
      %s92 = sadd.s32 %s91, 1
      %s93 = scalar_select %p90, %s91, %s92
      %p96 = pneg %p90
      %p97 = scmp.eq.s32.totalorder %s29, 1
      %p98 = por %p96, %p97
      %p99 = scmp.ne.s32.totalorder %s91, %s94
      %p100 = scmp.eq.s32.totalorder %s29, 0
      %p101 = por %p99, %p100
      %p102 = scmp.ne.s32.totalorder %s91, %s94
      %p103 = scmp.eq.s32.totalorder %s34, 1
      %p104 = por %p102, %p103
      %p105 = scmp.ne.s32.totalorder %s94, %s95
      %p106 = scmp.eq.s32.totalorder %s34, 0
      %p107 = por %p105, %p106
      %p108 = scmp.ne.s32.totalorder %s94, %s95
      %p109 = scmp.eq.s32.totalorder %s35, 1
      %p110 = por %p108, %p109
      %p112 = scmp.ne.s32.totalorder %s95, %s111
      %p113 = scmp.eq.s32.totalorder %s35, 0
      %p114 = por %p112, %p113
      %s115 = ssub.s32 %s29, %s36
      %p116 = scmp.eq.s32.totalorder %s115, 0
      %s118 = sadd.s32 %s117, 1
      %s119 = scalar_select %p116, %s117, %s118
      %p122 = pneg %p116
      %p123 = scmp.eq.s32.totalorder %s29, 1
      %p124 = por %p122, %p123
      %p125 = scmp.ne.s32.totalorder %s117, %s120
      %p126 = scmp.eq.s32.totalorder %s29, 0
      %p127 = por %p125, %p126
      %p128 = scmp.ne.s32.totalorder %s117, %s120
      %p129 = scmp.eq.s32.totalorder %s34, 1
      %p130 = por %p128, %p129
      %p131 = scmp.ne.s32.totalorder %s120, %s121
      %p132 = scmp.eq.s32.totalorder %s34, 0
      %p133 = por %p131, %p132
      %p134 = scmp.ne.s32.totalorder %s120, %s121
      %p135 = scmp.eq.s32.totalorder %s35, 1
      %p136 = por %p134, %p135
      %p138 = scmp.ne.s32.totalorder %s121, %s137
      %p139 = scmp.eq.s32.totalorder %s35, 0
      %p140 = por %p138, %p139
      %s142 = sadd.s32 %s141, 1
      %p145 = scmp.eq.s32.totalorder %s29, 1
      %p146 = scmp.ne.s32.totalorder %s141, %s143
      %p147 = scmp.eq.s32.totalorder %s29, 0
      %p148 = por %p146, %p147
      %p149 = scmp.ne.s32.totalorder %s141, %s143
      %p150 = scmp.eq.s32.totalorder %s34, 1
      %p151 = por %p149, %p150
      %p152 = scmp.ne.s32.totalorder %s143, %s144
      %p153 = scmp.eq.s32.totalorder %s34, 0
      %p154 = por %p152, %p153
      %p155 = scmp.ne.s32.totalorder %s143, %s144
      %p156 = scmp.eq.s32.totalorder %s35, 1
      %p157 = por %p155, %p156
      %p159 = scmp.ne.s32.totalorder %s144, %s158
      %p160 = scmp.eq.s32.totalorder %s35, 0
      %p161 = por %p159, %p160
      %s162 = ssub.s32 %s29, %s36
      %p163 = scmp.eq.s32.totalorder %s162, 0
      %s165 = sadd.s32 %s164, 1
      %s166 = scalar_select %p163, %s164, %s165
      %p169 = pneg %p163
      %p170 = scmp.eq.s32.totalorder %s29, 1
      %p171 = por %p169, %p170
      %p172 = scmp.ne.s32.totalorder %s164, %s167
      %p173 = scmp.eq.s32.totalorder %s29, 0
      %p174 = por %p172, %p173
      %p175 = scmp.ne.s32.totalorder %s164, %s167
      %p176 = scmp.eq.s32.totalorder %s34, 1
      %p177 = por %p175, %p176
      %p178 = scmp.ne.s32.totalorder %s167, %s168
      %p179 = scmp.eq.s32.totalorder %s34, 0
      %p180 = por %p178, %p179
      %p181 = scmp.ne.s32.totalorder %s167, %s168
      %p182 = scmp.eq.s32.totalorder %s35, 1
      %p183 = por %p181, %p182
      %p185 = scmp.ne.s32.totalorder %s168, %s184
      %p186 = scmp.eq.s32.totalorder %s35, 0
      %p187 = por %p185, %p186
      %s188 = ssub.s32 %s29, %s36
      %p189 = scmp.eq.s32.totalorder %s188, 0
      %s191 = sadd.s32 %s190, 1
      %s192 = scalar_select %p189, %s190, %s191
      %p195 = pneg %p189
      %p196 = scmp.eq.s32.totalorder %s29, 1
      %p197 = por %p195, %p196
      %p198 = scmp.ne.s32.totalorder %s190, %s193
      %p199 = scmp.eq.s32.totalorder %s29, 0
      %p200 = por %p198, %p199
      %p201 = scmp.ne.s32.totalorder %s190, %s193
      %p202 = scmp.eq.s32.totalorder %s34, 1
      %p203 = por %p201, %p202
      %p204 = scmp.ne.s32.totalorder %s193, %s194
      %p205 = scmp.eq.s32.totalorder %s34, 0
      %p206 = por %p204, %p205
      %p207 = scmp.ne.s32.totalorder %s193, %s194
      %p208 = scmp.eq.s32.totalorder %s35, 1
      %p209 = por %p207, %p208
      %p211 = scmp.ne.s32.totalorder %s194, %s210
      %p212 = scmp.eq.s32.totalorder %s35, 0
      %p213 = por %p211, %p212
      %s214 = ssub.s32 %s29, %s36
      %p215 = scmp.eq.s32.totalorder %s214, 0
      %s217 = sadd.s32 %s216, 1
      %s218 = scalar_select %p215, %s216, %s217
      %p221 = pneg %p215
      %p222 = scmp.eq.s32.totalorder %s29, 1
      %p223 = por %p221, %p222
      %p224 = scmp.ne.s32.totalorder %s216, %s219
      %p225 = scmp.eq.s32.totalorder %s29, 0
      %p226 = por %p224, %p225
      %p227 = scmp.ne.s32.totalorder %s216, %s219
      %p228 = scmp.eq.s32.totalorder %s34, 1
      %p229 = por %p227, %p228
      %p230 = scmp.ne.s32.totalorder %s219, %s220
      %p231 = scmp.eq.s32.totalorder %s34, 0
      %p232 = por %p230, %p231
      %p233 = scmp.ne.s32.totalorder %s219, %s220
      %p234 = scmp.eq.s32.totalorder %s35, 1
      %p235 = por %p233, %p234
      %p237 = scmp.ne.s32.totalorder %s220, %s236
      %p238 = scmp.eq.s32.totalorder %s35, 0
      %p239 = por %p237, %p238
      %p240 = scmp.le.s32.totalorder 1, %s29
      %p241 = scmp.lt.s32.totalorder %s29, 3
      %p242 = pnand %p240, %p241
      %p243 = pneg %p242
      // Predicated region
      $region9: #{tpu_custom_call.1} parent=5 // pred_check
        _
      $region10: #{tpu_custom_call.1} parent=5 // pred_check_branch
        %245 = sbr.rel (%p242) target = $region12
      $region11: #{tpu_custom_call.1} parent=5 // pred_region
        %s246 = ssub.s32 %s29, 1
        // Predicated region
        $region13: #{tpu_custom_call.1} parent=11 // pred_check
          %p247 = pneg %p154
        $region14: #{tpu_custom_call.1} parent=11 // pred_check_branch
          %249 = sbr.rel (%p247) target = $region16
        $region15: #{tpu_custom_call.1} parent=11 // pred_region
          _
        $region16: #{tpu_custom_call.1} parent=11 // pred_fallthru
          _
      $region12: #{tpu_custom_call.1} parent=5 // pred_fallthru
        _
      %p250 = scmp.lt.s32.totalorder %s29, 2
      // Predicated region
      $region17: #{tpu_custom_call.1} parent=5 // pred_check
        %p251 = pneg %p250
      $region18: #{tpu_custom_call.1} parent=5 // pred_check_branch
        %253 = sbr.rel (%p251) target = $region20
      $region19: #{tpu_custom_call.1} parent=5 // pred_region
        // Predicated region
        $region21: #{tpu_custom_call.1} parent=19 // pred_check
          %p254 = pneg %p49
        $region22: #{tpu_custom_call.1} parent=19 // pred_check_branch
          %256 = sbr.rel (%p254) target = $region24
        $region23: #{tpu_custom_call.1} parent=19 // pred_region
          %s257 = sand.u32 %s39, 1
          %s258 = scalar_lea.sflag [#allocation3], %s257
          %s259 = sand.u32 %s39, 1
          %s260 = smul.addr %s259, 8
          %s261 = scalar_lea.vmem [#allocation2], %s260
          %263 = vsyncadd %s258, 0
          %s264 = smul.addr %s29, 8
          %s265 = scalar_lea.hbm %s0, %s264
          %s267 = sshll.u32 %s265, 4
          %s268 = int_to_ptr.hbm [resolvable:$true] %s267
          %s269 = sshll.u32 %s261, 4
          %s270 = int_to_ptr.vmem [resolvable:$true] %s269
          %272 = dma.hbm_to_vmem [thread:$0]  %s268, 128, %s270, %s258
        $region24: #{tpu_custom_call.1} parent=19 // pred_fallthru
          _
        // Predicated region
        $region25: #{tpu_custom_call.1} parent=19 // pred_check
          %p273 = pneg %p75
        $region26: #{tpu_custom_call.1} parent=19 // pred_check_branch
          %275 = sbr.rel (%p273) target = $region28
        $region27: #{tpu_custom_call.1} parent=19 // pred_region
          %s276 = sand.u32 %s29, 1
          %s277 = scalar_lea.sflag [#allocation6], %s276
          %s278 = sand.u32 %s65, 1
          %s279 = smul.addr %s278, 8
          %s280 = scalar_lea.vmem [#allocation5], %s279
          %282 = vsyncadd %s277, 0
          %s283 = smul.addr %s29, 8
          %s284 = scalar_lea.hbm %s1, %s283
          %s286 = sshll.u32 %s284, 4
          %s287 = int_to_ptr.hbm [resolvable:$true] %s286
          %s288 = sshll.u32 %s280, 4
          %s289 = int_to_ptr.vmem [resolvable:$true] %s288
          %291 = dma.hbm_to_vmem [thread:$0]  %s287, 128, %s289, %s277
        $region28: #{tpu_custom_call.1} parent=19 // pred_fallthru
          _
        // Predicated region
        $region29: #{tpu_custom_call.1} parent=19 // pred_check
          %p292 = pneg %p101
        $region30: #{tpu_custom_call.1} parent=19 // pred_check_branch
          %294 = sbr.rel (%p292) target = $region32
        $region31: #{tpu_custom_call.1} parent=19 // pred_region
          %s295 = sand.u32 %s29, 1
          %s296 = scalar_lea.sflag [#allocation6], %s295
          %s297 = sand.u32 %s91, 1
          %s298 = smul.addr %s297, 8
          %s299 = scalar_lea.vmem [#allocation7], %s298
          %301 = vsyncadd %s296, 0
          %s302 = smul.addr %s29, 8
          %s303 = scalar_lea.hbm %s2, %s302
          %s305 = sshll.u32 %s303, 4
          %s306 = int_to_ptr.hbm [resolvable:$true] %s305
          %s307 = sshll.u32 %s299, 4
          %s308 = int_to_ptr.vmem [resolvable:$true] %s307
          %310 = dma.hbm_to_vmem [thread:$0]  %s306, 128, %s308, %s296
        $region32: #{tpu_custom_call.1} parent=19 // pred_fallthru
          _
        // Predicated region
        $region33: #{tpu_custom_call.1} parent=19 // pred_check
          %p311 = pneg %p127
        $region34: #{tpu_custom_call.1} parent=19 // pred_check_branch
          %313 = sbr.rel (%p311) target = $region36
        $region35: #{tpu_custom_call.1} parent=19 // pred_region
          %s314 = sand.u32 %s29, 1
          %s315 = scalar_lea.sflag [#allocation9], %s314
          %s316 = sand.u32 %s117, 1
          %s317 = smul.addr %s316, 8
          %s318 = scalar_lea.vmem [#allocation8], %s317
          %320 = vsyncadd %s315, 0
          %s321 = smul.addr %s29, 8
          %s322 = scalar_lea.hbm %s3, %s321
          %s324 = sshll.u32 %s322, 4
          %s325 = int_to_ptr.hbm [resolvable:$true] %s324
          %s326 = sshll.u32 %s318, 4
          %s327 = int_to_ptr.vmem [resolvable:$true] %s326
          %329 = dma.hbm_to_vmem [thread:$0]  %s325, 128, %s327, %s315
        $region36: #{tpu_custom_call.1} parent=19 // pred_fallthru
          _
        // Predicated region
        $region37: #{tpu_custom_call.1} parent=19 // pred_check
          %p330 = pneg %p174
        $region38: #{tpu_custom_call.1} parent=19 // pred_check_branch
          %332 = sbr.rel (%p330) target = $region40
        $region39: #{tpu_custom_call.1} parent=19 // pred_region
          %s333 = sand.u32 %s29, 1
          %s334 = scalar_lea.sflag [#allocation9], %s333
          %s335 = sand.u32 %s164, 1
          %s336 = smul.addr %s335, 64
          %s337 = scalar_lea.vmem [#allocation10], %s336
          %339 = vsyncadd %s334, 0
          %s340 = smul.addr %s29, 8
          %s341 = smul.addr %s340, 8
          %s342 = scalar_lea.hbm %s5, %s341
          %s343 = sshll.u32 %s342, 4
          %s344 = int_to_ptr.hbm [resolvable:$true] %s343
          %s345 = sshll.u32 %s337, 4
          %s346 = int_to_ptr.vmem [resolvable:$true] %s345
          %351 = dma.hbm_to_vmem [thread:$0]  %s344, 1024, %s346, %s334, 128, 128, 8
        $region40: #{tpu_custom_call.1} parent=19 // pred_fallthru
          _
      $region20: #{tpu_custom_call.1} parent=5 // pred_fallthru
        _
      %p352 = scmp.le.s32.totalorder 1, %s29
      %p353 = scmp.lt.s32.totalorder %s29, 3
      %p354 = pnand %p352, %p353
      %p355 = pneg %p354
      // Predicated region
      $region41: #{tpu_custom_call.1} parent=5 // pred_check
        _
      $region42: #{tpu_custom_call.1} parent=5 // pred_check_branch
        %357 = sbr.rel (%p354) target = $region44
      $region43: #{tpu_custom_call.1} parent=5 // pred_region
        %s358 = ssub.s32 %s29, 1
        %s359 = sand.u32 %s42, 1
        %s360 = scalar_lea.sflag [#allocation3], %s359
        %s361 = sand.u32 %s42, 1
        %s362 = smul.addr %s361, 8
        %s363 = scalar_lea.vmem [#allocation2], %s362
        // Predicated region
        $region45: #{tpu_custom_call.1} parent=43 // pred_check
          %p364 = pneg %p55
        $region46: #{tpu_custom_call.1} parent=43 // pred_check_branch
          %366 = sbr.rel (%p364) target = $region48
        $region47: #{tpu_custom_call.1} parent=43 // pred_region
          %368 = dma.done %s360, 128
        $region48: #{tpu_custom_call.1} parent=43 // pred_fallthru
          _
        %s369 = sand.u32 %s34, 1
        %s370 = scalar_lea.sflag [#allocation6], %s369
        %s371 = sand.u32 %s68, 1
        %s372 = smul.addr %s371, 8
        %s373 = scalar_lea.vmem [#allocation5], %s372
        // Predicated region
        $region49: #{tpu_custom_call.1} parent=43 // pred_check
          %p374 = pneg %p81
        $region50: #{tpu_custom_call.1} parent=43 // pred_check_branch
          %376 = sbr.rel (%p374) target = $region52
        $region51: #{tpu_custom_call.1} parent=43 // pred_region
          %378 = dma.done %s370, 128
        $region52: #{tpu_custom_call.1} parent=43 // pred_fallthru
          _
        %s379 = sand.u32 %s34, 1
        %s380 = scalar_lea.sflag [#allocation6], %s379
        %s381 = sand.u32 %s94, 1
        %s382 = smul.addr %s381, 8
        %s383 = scalar_lea.vmem [#allocation7], %s382
        // Predicated region
        $region53: #{tpu_custom_call.1} parent=43 // pred_check
          %p384 = pneg %p107
        $region54: #{tpu_custom_call.1} parent=43 // pred_check_branch
          %386 = sbr.rel (%p384) target = $region56
        $region55: #{tpu_custom_call.1} parent=43 // pred_region
          %388 = dma.done %s380, 128
        $region56: #{tpu_custom_call.1} parent=43 // pred_fallthru
          _
        %s389 = sand.u32 %s34, 1
        %s390 = scalar_lea.sflag [#allocation9], %s389
        %s391 = sand.u32 %s120, 1
        %s392 = smul.addr %s391, 8
        %s393 = scalar_lea.vmem [#allocation8], %s392
        // Predicated region
        $region57: #{tpu_custom_call.1} parent=43 // pred_check
          %p394 = pneg %p133
        $region58: #{tpu_custom_call.1} parent=43 // pred_check_branch
          %396 = sbr.rel (%p394) target = $region60
        $region59: #{tpu_custom_call.1} parent=43 // pred_region
          %398 = dma.done %s390, 128
        $region60: #{tpu_custom_call.1} parent=43 // pred_fallthru
          _
        %s399 = sand.u32 %s34, 1
        %s400 = scalar_lea.sflag [#allocation9], %s399
        %s401 = sand.u32 %s167, 1
        %s402 = smul.addr %s401, 64
        %s403 = scalar_lea.vmem [#allocation10], %s402
        // Predicated region
        $region61: #{tpu_custom_call.1} parent=43 // pred_check
          %p404 = pneg %p180
        $region62: #{tpu_custom_call.1} parent=43 // pred_check_branch
          %406 = sbr.rel (%p404) target = $region64
        $region63: #{tpu_custom_call.1} parent=43 // pred_region
          %408 = dma.done %s400, 1024
        $region64: #{tpu_custom_call.1} parent=43 // pred_fallthru
          _
        %s409 = sand.u32 %s42, 1
        %s410 = scalar_lea.sflag [#allocation3], %s409
        %s411 = sand.u32 %s42, 1
        %s412 = smul.addr %s411, 8
        %s413 = scalar_lea.vmem [#allocation2], %s412
        %p414 = pneg %p55
        %p415 = pneg %p52
        %s416 = sand.u32 %s34, 1
        %s417 = scalar_lea.sflag [#allocation6], %s416
        %s418 = sand.u32 %s68, 1
        %s419 = smul.addr %s418, 8
        %s420 = scalar_lea.vmem [#allocation5], %s419
        %p421 = pneg %p81
        %p422 = pneg %p78
        %s423 = sand.u32 %s34, 1
        %s424 = scalar_lea.sflag [#allocation6], %s423
        %s425 = sand.u32 %s94, 1
        %s426 = smul.addr %s425, 8
        %s427 = scalar_lea.vmem [#allocation7], %s426
        %p428 = pneg %p107
        %p429 = pneg %p104
        %s430 = sand.u32 %s34, 1
        %s431 = scalar_lea.sflag [#allocation9], %s430
        %s432 = sand.u32 %s120, 1
        %s433 = smul.addr %s432, 8
        %s434 = scalar_lea.vmem [#allocation8], %s433
        %p435 = pneg %p133
        %p436 = pneg %p130
        %p437 = pneg %p154
        %p438 = pneg %p151
        %s439 = sand.u32 %s34, 1
        %s440 = scalar_lea.sflag [#allocation9], %s439
        %s441 = sand.u32 %s167, 1
        %s442 = smul.addr %s441, 64
        %s443 = scalar_lea.vmem [#allocation10], %s442
        %p444 = pneg %p180
        %p445 = pneg %p177
        %p446 = pneg %p206
        %p447 = pneg %p203
        %s448 = sand.u32 %s193, 1
        %s449 = scalar_lea.sflag [#allocation4], %s448
        %s450 = sand.u32 %s193, 1
        %s451 = smul.addr %s450, 8
        %s452 = scalar_lea.vmem [#allocation11], %s451
        %p453 = pneg %p232
        %p454 = pneg %p229
        %s455 = sand.u32 %s219, 1
        %s456 = scalar_lea.sflag [#allocation13], %s455
        %s457 = sand.u32 %s219, 1
        %s458 = smul.addr %s457, 64
        %s459 = scalar_lea.vmem [#allocation12], %s458
        %v460 = vlaneseq
        %v461 = vshrl.u32 %v460, 7
        %v462 = vlaneseq
        %v463 = vand.u32 %v462, 127
        %vm464 = vcmp.le.s32.totalorder %v463, %v461
        %v465 = vsel %vm464, 1, 0
        %v466 = vcvt.s32.f32 %v465
        %v467 = vadd.s32 %v461, 8
        %v468 = vadd.s32 %v461, 16
        %v469 = vadd.s32 %v461, 24
        %vm470 = vcmp.eq.s32.totalorder %v461, %v463
        %vm471 = vcmp.eq.s32.totalorder %v467, %v463
        %vm472 = vcmp.eq.s32.totalorder %v468, %v463
        %vm473 = vcmp.eq.s32.totalorder %v469, %v463
        %v474 = vsel %vm470, 1, 0
        %v475 = vsel %vm471, 1, 0
        %v476 = vsel %vm472, 1, 0
        %v477 = vsel %vm473, 1, 0
        %v478 = vcvt.s32.f32 %v474
        %v479 = vcvt.s32.f32 %v475
        %v480 = vcvt.s32.f32 %v476
        %v481 = vcvt.s32.f32 %v477
        %v482 = vld [vmem:[%s4] sm:$0x1]
        %v483 = vld [vmem:[%s403] sm:$0xff]
        %v484 = vld [vmem:[%s403 + $0x8] sm:$0xff]
        %v485 = vld [vmem:[%s403 + $0x10] sm:$0xff]
        %v486 = vld [vmem:[%s403 + $0x18] sm:$0xff]
        %v487 = vld [vmem:[%s403 + $0x20] sm:$0xff]
        %v488 = vld [vmem:[%s403 + $0x28] sm:$0xff]
        %v489 = vld [vmem:[%s403 + $0x30] sm:$0xff]
        %v490 = vld [vmem:[%s403 + $0x38] sm:$0xff]
        %v491 = vld [vmem:[%s363] sm:$0xff]
        %v492 = vld [vmem:[%s373] sm:$0xff]
        %v493 = vld [vmem:[%s383] sm:$0xff]
        %v494 = vld [vmem:[%s393] sm:$0xff]
        %vm495 = vcmask 64512
        %v497 = vsel %vm495, %v466, 0
        %499 = vmatpush.msra.mxu0 0.0
        %500 = vmatpush.msra.mxu0 0.0
        %501 = vmatpush.msra.mxu0 0.0
        %502 = vmatpush.msra.mxu0 0.0
        %503 = vmatpush.msra.mxu0 0.0
        %504 = vmatpush.msra.mxu0 0.0
        %505 = vmatpush.msra.mxu0 0.0
        %506 = vmatpush.msra.mxu0 0.0
        %507 = vmatpush.msra.mxu0 0.0
        %508 = vmatpush.msra.mxu0 0.0
        %509 = vmatpush.msra.mxu0 0.0
        %510 = vmatpush.msra.mxu0 0.0
        %511 = vmatpush.msra.mxu0 0.0
        %512 = vmatpush.msra.mxu0 0.0
        %513 = vmatpush.msra.mxu0 0.0
        %514 = vmatpush.msra.mxu0 %v494
        %515 = vmatmul.f32.gmra.mxu0 %v497
        %v516 = vpop.f32.mrf.mxu0
        %v517 = vadd.f32 0.0, %v516
        %518 = vdwg.mxu0
        %v519 = vmul.f32 %v517, 0.5
        %v520 = vsub.f32 %v517, %v494
        %v521 = vmul.f32 %v520, 1.442695
        %v522 = vpow.pop %v521
        %v523 = vmul.f32 %v491, %v522
        %v524 = vperm.slane %v519, 7
        %v525 = vsub.f32 %v520, %v524
        %v526 = vmul.f32 %v525, 1.442695
        %v527 = vpow.pop %v526
        %v528 = vmul.f32 %v491, %v527
        %v529 = vsub.f32 %v524, %v517
        %v530 = vmul.f32 %v529, 1.442695
        %v531 = vpow.pop %v530
        %v532 = vmul.f32 %v492, %v531
        %v533 = vperm.slane %v517, 7
        %v534 = vsub.f32 %v533, %v517
        %v535 = vmul.f32 %v534, 1.442695
        %v536 = vpow.pop %v535
        %v537 = vmul.f32 %v492, %v536
        %v538 = vmul.f32 %v517, 1.442695
        %v539 = vpow.pop %v538
        %v541 = vperm.slane %v482, 0
        %v543 = vmul.f32 %v491, %v541
        %vm544 = vcmask 261120
        %v546 = vsel %vm544, %v528, 0
        %v549 = vsel %vm544, %v532, 0
        %551 = vmatpush.xpose.msra.mxu0 0.0
        %552 = vmatpush.xpose.msra.mxu0 0.0
        %553 = vmatpush.xpose.msra.mxu0 0.0
        %554 = vmatpush.xpose.msra.mxu0 0.0
        %555 = vmatpush.xpose.msra.mxu0 0.0
        %556 = vmatpush.xpose.msra.mxu0 0.0
        %557 = vmatpush.xpose.msra.mxu0 0.0
        %558 = vmatpush.xpose.msra.mxu0 0.0
        %559 = vmatpush.xpose.msra.mxu0 0.0
        %560 = vmatpush.xpose.msra.mxu0 0.0
        %561 = vmatpush.xpose.msra.mxu0 0.0
        %562 = vmatpush.xpose.msra.mxu0 0.0
        %563 = vmatpush.xpose.msra.mxu0 0.0
        %564 = vmatpush.xpose.msra.mxu0 0.0
        %565 = vmatpush.xpose.msra.mxu0 0.0
        %566 = vmatpush.xpose.msra.mxu0 %v549
        %567 = vmatmul.f32.gmra.mxu0 %v546
        %v568 = vpop.f32.mrf.mxu0
        %v569 = vadd.f32 0.0, %v568
        %570 = vdwg.mxu0
        %v572 = vsel %vm544, %v543, 0
        %v575 = vsel %vm544, %v492, 0
        %577 = vmatpush.xpose.msra.mxu0 0.0
        %578 = vmatpush.xpose.msra.mxu0 0.0
        %579 = vmatpush.xpose.msra.mxu0 0.0
        %580 = vmatpush.xpose.msra.mxu0 0.0
        %581 = vmatpush.xpose.msra.mxu0 0.0
        %582 = vmatpush.xpose.msra.mxu0 0.0
        %583 = vmatpush.xpose.msra.mxu0 0.0
        %584 = vmatpush.xpose.msra.mxu0 0.0
        %585 = vmatpush.xpose.msra.mxu0 0.0
        %586 = vmatpush.xpose.msra.mxu0 0.0
        %587 = vmatpush.xpose.msra.mxu0 0.0
        %588 = vmatpush.xpose.msra.mxu0 0.0
        %589 = vmatpush.xpose.msra.mxu0 0.0
        %590 = vmatpush.xpose.msra.mxu0 0.0
        %591 = vmatpush.xpose.msra.mxu0 0.0
        %592 = vmatpush.xpose.msra.mxu0 %v575
        %593 = vmatmul.f32.gmra.mxu0 %v572
        %v594 = vpop.f32.mrf.mxu0
        %v595 = vadd.f32 0.0, %v594
        %596 = vdwg.mxu0
        %vm597 = vcmp.lt.s32.totalorder %v463, %v461
        %v598 = vsel %vm597, %v569, 0.0
        %vm599 = vcmp.eq.s32.totalorder %v463, %v461
        %v600 = vsel %vm599, %v595, 0.0
        %v601 = vadd.f32 %v598, %v600
        %v603 = vsel %vm544, %v523, 0
        %605 = vmatpush.msra.mxu0 0.0
        %606 = vmatpush.msra.mxu0 0.0
        %607 = vmatpush.msra.mxu0 0.0
        %608 = vmatpush.msra.mxu0 0.0
        %609 = vmatpush.msra.mxu0 0.0
        %610 = vmatpush.msra.mxu0 0.0
        %611 = vmatpush.msra.mxu0 0.0
        %612 = vmatpush.msra.mxu0 0.0
        %613 = vmatpush.msra.mxu0 0.0
        %614 = vmatpush.msra.mxu0 0.0
        %615 = vmatpush.msra.mxu0 0.0
        %616 = vmatpush.msra.mxu0 0.0
        %617 = vmatpush.msra.mxu0 %v486
        %618 = vmatpush.msra.mxu0 %v485
        %619 = vmatpush.msra.mxu0 %v484
        %620 = vmatpush.msra.mxu0 %v483
        %621 = vmatmul.f32.gmra.mxu0 %v603
        %v622 = vpop.f32.mrf.mxu0
        %v623 = vadd.f32 0.0, %v622
        %624 = vdwg.mxu0
        %v626 = vsel %vm495, %v601, 0
        %628 = vmatpush.msra.mxu0 0.0
        %629 = vmatpush.msra.mxu0 0.0
        %630 = vmatpush.msra.mxu0 0.0
        %631 = vmatpush.msra.mxu0 0.0
        %632 = vmatpush.msra.mxu0 0.0
        %633 = vmatpush.msra.mxu0 0.0
        %634 = vmatpush.msra.mxu0 0.0
        %635 = vmatpush.msra.mxu0 0.0
        %636 = vmatpush.msra.mxu0 0.0
        %637 = vmatpush.msra.mxu0 0.0
        %638 = vmatpush.msra.mxu0 0.0
        %639 = vmatpush.msra.mxu0 0.0
        %640 = vmatpush.msra.mxu0 0.0
        %641 = vmatpush.msra.mxu0 0.0
        %642 = vmatpush.msra.mxu0 0.0
        %643 = vmatpush.msra.mxu0 %v493
        %644 = vmatmul.f32.gmra.mxu0 %v626
        %v645 = vpop.f32.mrf.mxu0
        %v646 = vadd.f32 %v623, %v645
        %647 = vdwg.mxu0
        %v648 = vperm.slane %v539, 7
        %v649 = vmul.f32 %v478, %v648
        %v650 = vmul.f32 %v479, %v648
        %v651 = vmul.f32 %v480, %v648
        %v652 = vmul.f32 %v481, %v648
        %653 = vxpose.xlu0.b32.start [1/16] %v537, 128
        %654 = vxpose.xlu0.b32.cont [2/16] 0.0, 128
        %655 = vxpose.xlu0.b32.cont [3/16] 0.0, 128
        %656 = vxpose.xlu0.b32.cont [4/16] 0.0, 128
        %657 = vxpose.xlu0.b32.cont [5/16] 0.0, 128
        %658 = vxpose.xlu0.b32.cont [6/16] 0.0, 128
        %659 = vxpose.xlu0.b32.cont [7/16] 0.0, 128
        %660 = vxpose.xlu0.b32.cont [8/16] 0.0, 128
        %661 = vxpose.xlu0.b32.cont [9/16] 0.0, 128
        %662 = vxpose.xlu0.b32.cont [10/16] 0.0, 128
        %663 = vxpose.xlu0.b32.cont [11/16] 0.0, 128
        %664 = vxpose.xlu0.b32.cont [12/16] 0.0, 128
        %665 = vxpose.xlu0.b32.cont [13/16] 0.0, 128
        %666 = vxpose.xlu0.b32.cont [14/16] 0.0, 128
        %667 = vxpose.xlu0.b32.cont [15/16] 0.0, 128
        %668 = vxpose.xlu0.b32.end [16/16] 0.0, 128
        %v669 = vpop.trf.xlu0
        %v670 = vpop.trf.xlu0
        %v671 = vpop.trf.xlu0
        %v672 = vpop.trf.xlu0
        %v673 = vpop.trf.xlu0
        %v674 = vpop.trf.xlu0
        %v675 = vpop.trf.xlu0
        %v676 = vpop.trf.xlu0
        %v677 = vpop.trf.xlu0
        %v678 = vpop.trf.xlu0
        %v679 = vpop.trf.xlu0
        %v680 = vpop.trf.xlu0
        %v681 = vpop.trf.xlu0
        %v682 = vpop.trf.xlu0
        %v683 = vpop.trf.xlu0
        %v684 = vpop.trf.xlu0
        %v686 = vsel %vm495, %v669, 0
        %v689 = vsel %vm495, %v670, 0
        %v692 = vsel %vm495, %v671, 0
        %v695 = vsel %vm495, %v672, 0
        %697 = vmatpush.msra.mxu0 0.0
        %698 = vmatpush.msra.mxu0 0.0
        %699 = vmatpush.msra.mxu0 0.0
        %700 = vmatpush.msra.mxu0 0.0
        %701 = vmatpush.msra.mxu0 0.0
        %702 = vmatpush.msra.mxu0 0.0
        %703 = vmatpush.msra.mxu0 0.0
        %704 = vmatpush.msra.mxu0 0.0
        %705 = vmatpush.msra.mxu0 0.0
        %706 = vmatpush.msra.mxu0 0.0
        %707 = vmatpush.msra.mxu0 0.0
        %708 = vmatpush.msra.mxu0 0.0
        %709 = vmatpush.msra.mxu0 0.0
        %710 = vmatpush.msra.mxu0 0.0
        %711 = vmatpush.msra.mxu0 0.0
        %712 = vmatpush.msra.mxu0 %v493
        %713 = vmatmul.f32.gmra.mxu0 %v686
        %v714 = vpop.f32.mrf.mxu0
        %v715 = vadd.f32 0.0, %v714
        %716 = vmatmul.f32.gmra.mxu0 %v689
        %v717 = vpop.f32.mrf.mxu0
        %v718 = vadd.f32 0.0, %v717
        %719 = vmatmul.f32.gmra.mxu0 %v692
        %v720 = vpop.f32.mrf.mxu0
        %v721 = vadd.f32 0.0, %v720
        %722 = vmatmul.f32.gmra.mxu0 %v695
        %v723 = vpop.f32.mrf.mxu0
        %v724 = vadd.f32 0.0, %v723
        %725 = vdwg.mxu0
        %v727 = vsel %vm544, %v649, 0
        %v730 = vsel %vm544, %v650, 0
        %v733 = vsel %vm544, %v651, 0
        %v736 = vsel %vm544, %v652, 0
        %738 = vmatpush.msra.mxu0 0.0
        %739 = vmatpush.msra.mxu0 0.0
        %740 = vmatpush.msra.mxu0 0.0
        %741 = vmatpush.msra.mxu0 0.0
        %742 = vmatpush.msra.mxu0 0.0
        %743 = vmatpush.msra.mxu0 0.0
        %744 = vmatpush.msra.mxu0 0.0
        %745 = vmatpush.msra.mxu0 0.0
        %746 = vmatpush.msra.mxu0 0.0
        %747 = vmatpush.msra.mxu0 0.0
        %748 = vmatpush.msra.mxu0 0.0
        %749 = vmatpush.msra.mxu0 0.0
        %750 = vmatpush.msra.mxu0 %v486
        %751 = vmatpush.msra.mxu0 %v485
        %752 = vmatpush.msra.mxu0 %v484
        %753 = vmatpush.msra.mxu0 %v483
        %754 = vmatmul.f32.gmra.mxu0 %v727
        %v755 = vpop.f32.mrf.mxu0
        %v756 = vadd.f32 %v715, %v755
        %757 = vmatmul.f32.gmra.mxu0 %v730
        %v758 = vpop.f32.mrf.mxu0
        %v759 = vadd.f32 %v718, %v758
        %760 = vmatmul.f32.gmra.mxu0 %v733
        %v761 = vpop.f32.mrf.mxu0
        %v762 = vadd.f32 %v721, %v761
        %763 = vmatmul.f32.gmra.mxu0 %v736
        %v764 = vpop.f32.mrf.mxu0
        %v765 = vadd.f32 %v724, %v764
        %766 = vdwg.mxu0
        %767 = vrot.lane.b32.xlu0 %v528, 96
        %v768 = vpop.permute.xlu0 %767
        %769 = vrot.lane.b32.xlu0 %v532, 96
        %v770 = vpop.permute.xlu0 %769
        %v771 = vsel %vm544, %v768, 0
        %v773 = vsel %vm544, %v770, 0
        %775 = vmatpush.xpose.msra.mxu0 0.0
        %776 = vmatpush.xpose.msra.mxu0 0.0
        %777 = vmatpush.xpose.msra.mxu0 0.0
        %778 = vmatpush.xpose.msra.mxu0 0.0
        %779 = vmatpush.xpose.msra.mxu0 0.0
        %780 = vmatpush.xpose.msra.mxu0 0.0
        %781 = vmatpush.xpose.msra.mxu0 0.0
        %782 = vmatpush.xpose.msra.mxu0 0.0
        %783 = vmatpush.xpose.msra.mxu0 0.0
        %784 = vmatpush.xpose.msra.mxu0 0.0
        %785 = vmatpush.xpose.msra.mxu0 0.0
        %786 = vmatpush.xpose.msra.mxu0 0.0
        %787 = vmatpush.xpose.msra.mxu0 0.0
        %788 = vmatpush.xpose.msra.mxu0 0.0
        %789 = vmatpush.xpose.msra.mxu0 0.0
        %790 = vmatpush.xpose.msra.mxu0 %v773
        %791 = vmatmul.f32.gmra.mxu0 %v771
        %v792 = vpop.f32.mrf.mxu0
        %v793 = vadd.f32 0.0, %v792
        %794 = vdwg.mxu0
        %795 = vrot.lane.b32.xlu0 %v543, 96
        %v796 = vpop.permute.xlu0 %795
        %797 = vrot.lane.b32.xlu0 %v492, 96
        %v798 = vpop.permute.xlu0 %797
        %v799 = vsel %vm544, %v796, 0
        %v801 = vsel %vm544, %v798, 0
        %803 = vmatpush.xpose.msra.mxu0 0.0
        %804 = vmatpush.xpose.msra.mxu0 0.0
        %805 = vmatpush.xpose.msra.mxu0 0.0
        %806 = vmatpush.xpose.msra.mxu0 0.0
        %807 = vmatpush.xpose.msra.mxu0 0.0
        %808 = vmatpush.xpose.msra.mxu0 0.0
        %809 = vmatpush.xpose.msra.mxu0 0.0
        %810 = vmatpush.xpose.msra.mxu0 0.0
        %811 = vmatpush.xpose.msra.mxu0 0.0
        %812 = vmatpush.xpose.msra.mxu0 0.0
        %813 = vmatpush.xpose.msra.mxu0 0.0
        %814 = vmatpush.xpose.msra.mxu0 0.0
        %815 = vmatpush.xpose.msra.mxu0 0.0
        %816 = vmatpush.xpose.msra.mxu0 0.0
        %817 = vmatpush.xpose.msra.mxu0 0.0
        %818 = vmatpush.xpose.msra.mxu0 %v801
        %819 = vmatmul.f32.gmra.mxu0 %v799
        %v820 = vpop.f32.mrf.mxu0
        %v821 = vadd.f32 0.0, %v820
        %822 = vdwg.mxu0
        %v823 = vsel %vm597, %v793, 0.0
        %v824 = vsel %vm599, %v821, 0.0
        %v825 = vadd.f32 %v823, %v824
        %826 = vrot.lane.b32.xlu0 %v523, 96
        %v827 = vpop.permute.xlu0 %826
        %v828 = vsel %vm544, %v827, 0
        %830 = vmatpush.msra.mxu0 0.0
        %831 = vmatpush.msra.mxu0 0.0
        %832 = vmatpush.msra.mxu0 0.0
        %833 = vmatpush.msra.mxu0 0.0
        %834 = vmatpush.msra.mxu0 0.0
        %835 = vmatpush.msra.mxu0 0.0
        %836 = vmatpush.msra.mxu0 0.0
        %837 = vmatpush.msra.mxu0 0.0
        %838 = vmatpush.msra.mxu0 0.0
        %839 = vmatpush.msra.mxu0 0.0
        %840 = vmatpush.msra.mxu0 0.0
        %841 = vmatpush.msra.mxu0 0.0
        %842 = vmatpush.msra.mxu0 %v490
        %843 = vmatpush.msra.mxu0 %v489
        %844 = vmatpush.msra.mxu0 %v488
        %845 = vmatpush.msra.mxu0 %v487
        %846 = vmatmul.f32.gmra.mxu0 %v828
        %v847 = vpop.f32.mrf.mxu0
        %v848 = vadd.f32 0.0, %v847
        %849 = vdwg.mxu0
        %851 = vrot.lane.b32.xlu0 %v493, 96
        %v852 = vpop.permute.xlu0 %851
        %v855 = vsel %vm495, %v825, 0
        %857 = vmatpush.msra.mxu0 0.0
        %858 = vmatpush.msra.mxu0 0.0
        %859 = vmatpush.msra.mxu0 0.0
        %860 = vmatpush.msra.mxu0 0.0
        %861 = vmatpush.msra.mxu0 0.0
        %862 = vmatpush.msra.mxu0 0.0
        %863 = vmatpush.msra.mxu0 0.0
        %864 = vmatpush.msra.mxu0 0.0
        %865 = vmatpush.msra.mxu0 0.0
        %866 = vmatpush.msra.mxu0 0.0
        %867 = vmatpush.msra.mxu0 0.0
        %868 = vmatpush.msra.mxu0 0.0
        %869 = vmatpush.msra.mxu0 0.0
        %870 = vmatpush.msra.mxu0 0.0
        %871 = vmatpush.msra.mxu0 0.0
        %872 = vmatpush.msra.mxu0 %v852
        %873 = vmatmul.f32.gmra.mxu0 %v855
        %v874 = vpop.f32.mrf.mxu0
        %v875 = vadd.f32 %v848, %v874
        %876 = vdwg.mxu0
        %878 = vrot.lane.b32.xlu0 %v648, 96
        %v879 = vpop.permute.xlu0 %878
        %v881 = vmul.f32 %v478, %v879
        %v882 = vmul.f32 %v479, %v879
        %v883 = vmul.f32 %v480, %v879
        %v884 = vmul.f32 %v481, %v879
        %886 = vrot.lane.b32.xlu0 %v537, 96
        %v887 = vpop.permute.xlu0 %886
        %889 = vxpose.xlu0.b32.start [1/16] %v887, 128
        %890 = vxpose.xlu0.b32.cont [2/16] 0.0, 128
        %891 = vxpose.xlu0.b32.cont [3/16] 0.0, 128
        %892 = vxpose.xlu0.b32.cont [4/16] 0.0, 128
        %893 = vxpose.xlu0.b32.cont [5/16] 0.0, 128
        %894 = vxpose.xlu0.b32.cont [6/16] 0.0, 128
        %895 = vxpose.xlu0.b32.cont [7/16] 0.0, 128
        %896 = vxpose.xlu0.b32.cont [8/16] 0.0, 128
        %897 = vxpose.xlu0.b32.cont [9/16] 0.0, 128
        %898 = vxpose.xlu0.b32.cont [10/16] 0.0, 128
        %899 = vxpose.xlu0.b32.cont [11/16] 0.0, 128
        %900 = vxpose.xlu0.b32.cont [12/16] 0.0, 128
        %901 = vxpose.xlu0.b32.cont [13/16] 0.0, 128
        %902 = vxpose.xlu0.b32.cont [14/16] 0.0, 128
        %903 = vxpose.xlu0.b32.cont [15/16] 0.0, 128
        %904 = vxpose.xlu0.b32.end [16/16] 0.0, 128
        %v905 = vpop.trf.xlu0
        %v906 = vpop.trf.xlu0
        %v907 = vpop.trf.xlu0
        %v908 = vpop.trf.xlu0
        %v909 = vpop.trf.xlu0
        %v910 = vpop.trf.xlu0
        %v911 = vpop.trf.xlu0
        %v912 = vpop.trf.xlu0
        %v913 = vpop.trf.xlu0
        %v914 = vpop.trf.xlu0
        %v915 = vpop.trf.xlu0
        %v916 = vpop.trf.xlu0
        %v917 = vpop.trf.xlu0
        %v918 = vpop.trf.xlu0
        %v919 = vpop.trf.xlu0
        %v920 = vpop.trf.xlu0
        %v922 = vsel %vm495, %v905, 0
        %v925 = vsel %vm495, %v906, 0
        %v928 = vsel %vm495, %v907, 0
        %v931 = vsel %vm495, %v908, 0
        %933 = vmatpush.msra.mxu0 0.0
        %934 = vmatpush.msra.mxu0 0.0
        %935 = vmatpush.msra.mxu0 0.0
        %936 = vmatpush.msra.mxu0 0.0
        %937 = vmatpush.msra.mxu0 0.0
        %938 = vmatpush.msra.mxu0 0.0
        %939 = vmatpush.msra.mxu0 0.0
        %940 = vmatpush.msra.mxu0 0.0
        %941 = vmatpush.msra.mxu0 0.0
        %942 = vmatpush.msra.mxu0 0.0
        %943 = vmatpush.msra.mxu0 0.0
        %944 = vmatpush.msra.mxu0 0.0
        %945 = vmatpush.msra.mxu0 0.0
        %946 = vmatpush.msra.mxu0 0.0
        %947 = vmatpush.msra.mxu0 0.0
        %948 = vmatpush.msra.mxu0 %v852
        %949 = vmatmul.f32.gmra.mxu0 %v922
        %v950 = vpop.f32.mrf.mxu0
        %v951 = vadd.f32 0.0, %v950
        %952 = vmatmul.f32.gmra.mxu0 %v925
        %v953 = vpop.f32.mrf.mxu0
        %v954 = vadd.f32 0.0, %v953
        %955 = vmatmul.f32.gmra.mxu0 %v928
        %v956 = vpop.f32.mrf.mxu0
        %v957 = vadd.f32 0.0, %v956
        %958 = vmatmul.f32.gmra.mxu0 %v931
        %v959 = vpop.f32.mrf.mxu0
        %v960 = vadd.f32 0.0, %v959
        %961 = vdwg.mxu0
        %v963 = vsel %vm544, %v881, 0
        %v966 = vsel %vm544, %v882, 0
        %v969 = vsel %vm544, %v883, 0
        %v972 = vsel %vm544, %v884, 0
        %974 = vmatpush.msra.mxu0 0.0
        %975 = vmatpush.msra.mxu0 0.0
        %976 = vmatpush.msra.mxu0 0.0
        %977 = vmatpush.msra.mxu0 0.0
        %978 = vmatpush.msra.mxu0 0.0
        %979 = vmatpush.msra.mxu0 0.0
        %980 = vmatpush.msra.mxu0 0.0
        %981 = vmatpush.msra.mxu0 0.0
        %982 = vmatpush.msra.mxu0 0.0
        %983 = vmatpush.msra.mxu0 0.0
        %984 = vmatpush.msra.mxu0 0.0
        %985 = vmatpush.msra.mxu0 0.0
        %986 = vmatpush.msra.mxu0 %v490
        %987 = vmatpush.msra.mxu0 %v489
        %988 = vmatpush.msra.mxu0 %v488
        %989 = vmatpush.msra.mxu0 %v487
        %990 = vmatmul.f32.gmra.mxu0 %v963
        %v991 = vpop.f32.mrf.mxu0
        %v992 = vadd.f32 %v951, %v991
        %993 = vmatmul.f32.gmra.mxu0 %v966
        %v994 = vpop.f32.mrf.mxu0
        %v995 = vadd.f32 %v954, %v994
        %996 = vmatmul.f32.gmra.mxu0 %v969
        %v997 = vpop.f32.mrf.mxu0
        %v998 = vadd.f32 %v957, %v997
        %999 = vmatmul.f32.gmra.mxu0 %v972
        %v1000 = vpop.f32.mrf.mxu0
        %v1001 = vadd.f32 %v960, %v1000
        %1002 = vdwg.mxu0
        %1004 = vrot.lane.b32.xlu0 %v875, 32
        %v1005 = vpop.permute.xlu0 %1004
        %v1007 = vsel %vm544, %v646, %v1005
        %vm1008 = vcmask 523264
        %1009 = vst.msk [vmem:[%s452] sm:$0xff] %vm1008, %v1007
        %1010 = vst.msk [vmem:[%s459] sm:$0xff] %vm544, %v756
        %1011 = vst.msk [vmem:[%s459 + $0x8] sm:$0xff] %vm544, %v759
        %1012 = vst.msk [vmem:[%s459 + $0x10] sm:$0xff] %vm544, %v762
        %1013 = vst.msk [vmem:[%s459 + $0x18] sm:$0xff] %vm544, %v765
        %1014 = vst.msk [vmem:[%s459 + $0x20] sm:$0xff] %vm544, %v992
        %1015 = vst.msk [vmem:[%s459 + $0x28] sm:$0xff] %vm544, %v995
        %1016 = vst.msk [vmem:[%s459 + $0x30] sm:$0xff] %vm544, %v998
        %1017 = vst.msk [vmem:[%s459 + $0x38] sm:$0xff] %vm544, %v1001
        %s1018 = sand.u32 %s193, 1
        %s1019 = scalar_lea.sflag [#allocation4], %s1018
        %s1020 = sand.u32 %s193, 1
        %s1021 = smul.addr %s1020, 8
        %s1022 = scalar_lea.vmem [#allocation11], %s1021
        %s1023 = sand.u32 %s219, 1
        %s1024 = scalar_lea.sflag [#allocation13], %s1023
        %s1025 = sand.u32 %s219, 1
        %s1026 = smul.addr %s1025, 64
        %s1027 = scalar_lea.vmem [#allocation12], %s1026
        // Predicated region
        $region65: #{tpu_custom_call.1} parent=43 // pred_check
          %p1028 = pneg %p203
        $region66: #{tpu_custom_call.1} parent=43 // pred_check_branch
          %1030 = sbr.rel (%p1028) target = $region68
        $region67: #{tpu_custom_call.1} parent=43 // pred_region
          %1032 = vsyncadd %s1019, 0
          %s1033 = smul.addr %s34, 8
          %s1034 = scalar_lea.hbm %s6, %s1033
          %s1036 = sshll.u32 %s1022, 4
          %s1037 = int_to_ptr.vmem [resolvable:$true] %s1036
          %s1038 = sshll.u32 %s1034, 4
          %s1039 = int_to_ptr.hbm [resolvable:$true] %s1038
          %1041 = dma.vmem_to_hbm [thread:$0]  %s1037, 128, %s1039, %s1019
        $region68: #{tpu_custom_call.1} parent=43 // pred_fallthru
          _
        // Predicated region
        $region69: #{tpu_custom_call.1} parent=43 // pred_check
          %p1042 = pneg %p229
        $region70: #{tpu_custom_call.1} parent=43 // pred_check_branch
          %1044 = sbr.rel (%p1042) target = $region72
        $region71: #{tpu_custom_call.1} parent=43 // pred_region
          %1046 = vsyncadd %s1024, 0
          %s1047 = smul.addr %s34, 8
          %s1048 = smul.addr %s1047, 8
          %s1049 = scalar_lea.hbm %s7, %s1048
          %s1050 = sshll.u32 %s1027, 4
          %s1051 = int_to_ptr.vmem [resolvable:$true] %s1050
          %s1052 = sshll.u32 %s1049, 4
          %s1053 = int_to_ptr.hbm [resolvable:$true] %s1052
          %1058 = dma.vmem_to_hbm [thread:$0]  %s1051, 1024, %s1053, %s1024, 128, 128, 8
        $region72: #{tpu_custom_call.1} parent=43 // pred_fallthru
          _
      $region44: #{tpu_custom_call.1} parent=5 // pred_fallthru
        _
      %p1059 = scmp.le.s32.totalorder 2, %s29
      // Predicated region
      $region73: #{tpu_custom_call.1} parent=5 // pred_check
        %p1060 = pneg %p1059
      $region74: #{tpu_custom_call.1} parent=5 // pred_check_branch
        %1062 = sbr.rel (%p1060) target = $region76
      $region75: #{tpu_custom_call.1} parent=5 // pred_region
        %s1063 = ssub.s32 %s29, 2
        // Predicated region
        $region77: #{tpu_custom_call.1} parent=75 // pred_check
          %p1064 = pneg %p209
        $region78: #{tpu_custom_call.1} parent=75 // pred_check_branch
          %1066 = sbr.rel (%p1064) target = $region80
        $region79: #{tpu_custom_call.1} parent=75 // pred_region
          %s1067 = sand.u32 %s194, 1
          %s1068 = scalar_lea.sflag [#allocation4], %s1067
          %s1069 = sand.u32 %s194, 1
          %s1070 = smul.addr %s1069, 8
          %s1071 = scalar_lea.vmem [#allocation11], %s1070
          %1073 = dma.done %s1068, 128
        $region80: #{tpu_custom_call.1} parent=75 // pred_fallthru
          _
        // Predicated region
        $region81: #{tpu_custom_call.1} parent=75 // pred_check
          %p1074 = pneg %p235
        $region82: #{tpu_custom_call.1} parent=75 // pred_check_branch
          %1076 = sbr.rel (%p1074) target = $region84
        $region83: #{tpu_custom_call.1} parent=75 // pred_region
          %s1077 = sand.u32 %s220, 1
          %s1078 = scalar_lea.sflag [#allocation13], %s1077
          %s1079 = sand.u32 %s220, 1
          %s1080 = smul.addr %s1079, 64
          %s1081 = scalar_lea.vmem [#allocation12], %s1080
          %1083 = dma.done %s1078, 1024
        $region84: #{tpu_custom_call.1} parent=75 // pred_fallthru
          _
      $region76: #{tpu_custom_call.1} parent=5 // pred_fallthru
        _
    $region6: #{tpu_custom_call.1} parent=1 // loop_footer
      %s33 = sadd.s32 1, %s29
    $region7: #{tpu_custom_call.1} parent=1 // loop_footer_branch
      %28 = sbr.rel target = $region3
    $region8: #{tpu_custom_call.1} parent=1 // loop_exit
      _
    %1084 = vsyncpa [#allocation3], 1
    %s1085 = scalar_lea.sflag [#allocation3], 1
    %1086 = vsyncpa %s1085, 1
    %1087 = vsyncpa [#allocation6], 1
    %s1088 = scalar_lea.sflag [#allocation6], 1
    %1089 = vsyncpa %s1088, 1
    %1090 = vsyncpa [#allocation9], 1
    %s1091 = scalar_lea.sflag [#allocation9], 1
    %1092 = vsyncpa %s1091, 1
    %1093 = vsyncpa [#allocation4], 1
    %s1094 = scalar_lea.sflag [#allocation4], 1
    %1095 = vsyncpa %s1094, 1
    %1096 = vsyncpa [#allocation13], 1
    %s1097 = scalar_lea.sflag [#allocation13], 1
    %1098 = vsyncpa %s1097, 1

</llo_original>
